<compile_context>
chip_gen: v7x
topology: tpu7x:2x2x1
jax: 0.10.0
libtpu: 0.0.40
codegen_flags: <defaults>
</compile_context>

<pallas_src>
import jax
import jax.numpy as jnp
from jax.experimental import pallas as pl
from jax.experimental.pallas import tpu as pltpu


def _make_kernel(num_heads, head_dim, embed_dim, single_q_tile):
    """Build the kernel body.  When single_q_tile, x is passed only once and the
    same ref serves both the Q tile and the K/V sequence."""
    H, Dh, E = num_heads, head_dim, embed_dim
    f32 = jnp.float32

    def bf(a):
        return a.astype(jnp.bfloat16)

    def body(x_q_ref, x_kv_ref,
             wqkv_ref, bqkv_ref, wo_ref, bo_ref,
             g1_ref, be1_ref, w1_ref, b1_ref, w2_ref, b2_ref,
             g2_ref, be2_ref,
             o_ref,
             q_sc, k_sc, v_sc, attn_sc):

        x_q = x_q_ref[...]                          # (TQ, E) f32 (also residual)

        if single_q_tile:
            # One grid step per batch element: single fused (S, 3E) projection.
            qkv = (jnp.dot(bf(x_q), wqkv_ref[...], preferred_element_type=f32)
                   + bqkv_ref[...])                 # (S, 3E) f32
            q = qkv[:, :E]
            k = qkv[:, E:2 * E]
            v = qkv[:, 2 * E:]
            for h in range(H):
                lo = h * Dh
                k_sc[h] = bf(k[:, lo:lo + Dh])
                v_sc[h] = bf(v[:, lo:lo + Dh])
        else:
            # K/V are shared by every query tile of this batch element: project
            # and stage them once; scratch persists across the sequential qi axis.
            @pl.when(pl.program_id(1) == 0)
            def _():
                x_kv = x_kv_ref[...]                # (S, E) f32
                kv = (jnp.dot(bf(x_kv), wqkv_ref[:, E:],
                              preferred_element_type=f32)
                      + bqkv_ref[:, E:])            # (S, 2E) f32
                for h in range(H):
                    lo = h * Dh
                    k_sc[h] = bf(kv[:, lo:lo + Dh])
                    v_sc[h] = bf(kv[:, E + lo:E + lo + Dh])

            # Project only the Q tile for this grid step.
            q = (jnp.dot(bf(x_q), wqkv_ref[:, :E], preferred_element_type=f32)
                 + bqkv_ref[:, :E])                 # (TQ, E) f32

        # 1/sqrt(Dh) is folded into the Q columns of wqkv/bqkv (init_params).
        for h in range(H):
            lo = h * Dh
            q_sc[h] = bf(q[:, lo:lo + Dh])

        # --- batched scaled-dot-product attention, f32 softmax ---
        s = jnp.einsum("hqd,hkd->hqk", q_sc[...], k_sc[...],
                       preferred_element_type=f32)  # (H, TQ, S)
        s = s - jnp.max(s, axis=-1, keepdims=True)
        p = jnp.exp(s)
        p = p * pl.reciprocal(jnp.sum(p, axis=-1, keepdims=True), approx=True)
        o_heads = jnp.einsum("hqk,hkd->hqd", bf(p), v_sc[...],
                             preferred_element_type=f32)  # (H, TQ, Dh)

        # Reassemble a lane-dense (TQ, E) bf16 slab for the output projection.
        for h in range(H):
            lo = h * Dh
            attn_sc[:, lo:lo + Dh] = bf(o_heads[h])

        attn = (jnp.dot(attn_sc[...], wo_ref[...], preferred_element_type=f32)
                + bo_ref[...])                      # (TQ, E)

        def layer_norm(y, g, b):
            mu = jnp.mean(y, axis=-1, keepdims=True)
            var = jnp.mean((y - mu) * (y - mu), axis=-1, keepdims=True)
            return (y - mu) * jax.lax.rsqrt(var + 1e-6) * g + b

        # --- residual + LN1 ---
        out1 = layer_norm(x_q + attn, g1_ref[...], be1_ref[...])

        # --- MLP: Linear -> ReLU -> Linear (bf16 MXU inputs, f32 accumulate) ---
        h1 = jnp.dot(bf(out1), w1_ref[...], preferred_element_type=f32) + b1_ref[...]
        h1 = jnp.maximum(h1, 0.0)
        h2 = jnp.dot(bf(h1), w2_ref[...], preferred_element_type=f32) + b2_ref[...]

        # --- residual + LN2 ---
        o_ref[...] = layer_norm(out1 + h2, g2_ref[...], be2_ref[...]).astype(o_ref.dtype)

    if single_q_tile:
        def kernel(x_ref, *rest):
            body(x_ref, x_ref, *rest)
        return kernel
    return body


def _vmem_limit_bytes(param_bytes, S, tq, E, H, Dh, mlp_dim):
    """Generation-aware VMEM budget with headroom for Mosaic internal scratch."""
    f32b, bf16b = 4, 2
    act_in = f32b * (tq * E + S * E) * 2            # x blocks (double-buffered)
    act_out = f32b * tq * E * 2                     # output block (double-buffered)
    scratch = bf16b * (H * tq * Dh + 2 * H * S * Dh + tq * E)
    live = f32b * (S * 3 * E                        # qkv / kv projection
                   + 2 * H * tq * S                 # scores + probabilities
                   + tq * mlp_dim                   # MLP hidden
                   + 4 * tq * E)                    # q / attn / out1 / h2
    est = param_bytes + act_in + act_out + scratch + live
    try:
        cap = pltpu.get_tpu_info().vmem_capacity_bytes
    except Exception:
        cap = 64 * 2 ** 20                          # conservative (v7x-sized) fallback
    return int(max(32 * 2 ** 20, min(int(0.85 * cap), 2 * est)))


def transformer_block(x, params, *, num_heads, q_block=None):
    """x: (B, S, E) float32. params: dict of weights (see init_params)."""
    B, S, E = x.shape
    mlp_dim = params["w1"].shape[1]
    Dh = E // num_heads

    # Optional query tiling (useful on v7x / long S). Prefer multiples of 256 on
    # v6e/v7x (256x256 MXU); multiples of 8 are the hard requirement.
    if (q_block is not None and q_block < S and S % q_block == 0
            and q_block % 8 == 0):
        tq = q_block
    else:
        tq = S
    nq = S // tq
    single = (nq == 1)

    kernel = _make_kernel(num_heads, Dh, E, single)

    def const(shape):
        # Whole-array block, same for every grid step -> single-buffer it.
        idx = lambda b, qi: (0,) * len(shape)
        try:
            return pl.BlockSpec(shape, idx, pipeline_mode=pl.Buffered(1))
        except Exception:
            return pl.BlockSpec(shape, idx)

    x_q_spec = pl.BlockSpec((pl.Squeezed(), tq, E), lambda b, qi: (b, qi, 0))
    weight_specs = [
        const((E, 3 * E)), const((1, 3 * E)),       # wqkv (bf16), bqkv
        const((E, E)), const((1, E)),               # wo (bf16), bo
        const((1, E)), const((1, E)),               # ln1 gamma, beta
        const((E, mlp_dim)), const((1, mlp_dim)),   # w1 (bf16), b1
        const((mlp_dim, E)), const((1, E)),         # w2 (bf16), b2
        const((1, E)), const((1, E)),               # ln2 gamma, beta
    ]
    if single:
        in_specs = [x_q_spec] + weight_specs
        x_args = (x,)
    else:
        # Full-sequence view only needed when query-tiling (K/V hoist at qi == 0).
        x_kv_spec = pl.BlockSpec((pl.Squeezed(), S, E), lambda b, qi: (b, 0, 0))
        in_specs = [x_q_spec, x_kv_spec] + weight_specs
        x_args = (x, x)

    scratch_shapes = [
        pltpu.VMEM((num_heads, tq, Dh), jnp.bfloat16),   # q heads (per tile)
        pltpu.VMEM((num_heads, S, Dh), jnp.bfloat16),    # k heads (persist over qi)
        pltpu.VMEM((num_heads, S, Dh), jnp.bfloat16),    # v heads (persist over qi)
        pltpu.VMEM((tq, E), jnp.bfloat16),               # attention slab (MXU input)
    ]

    param_bytes = sum(int(v.size) * v.dtype.itemsize for v in params.values())
    vmem_limit = _vmem_limit_bytes(param_bytes, S, tq, E, num_heads, Dh, mlp_dim)

    flops = (2 * B * S * E * 3 * E                   # QKV projection (K/V hoisted)
             + 4 * B * num_heads * S * S * Dh        # scores + PV
             + 2 * B * S * E * E                     # output projection
             + 4 * B * S * E * mlp_dim)              # MLP
    cost = pl.CostEstimate(
        flops=int(flops),
        transcendentals=int(B * num_heads * S * (S + 1) + 2 * B * S),
        bytes_accessed=int((2 if single else 3) * B * S * E * 4 + param_bytes),
    )

    out = pl.pallas_call(
        kernel,
        out_shape=jax.ShapeDtypeStruct((B, S, E), x.dtype),
        grid_spec=pltpu.PrefetchScalarGridSpec(
            num_scalar_prefetch=0,
            grid=(B, nq),
            in_specs=in_specs,
            out_specs=pl.BlockSpec((pl.Squeezed(), tq, E), lambda b, qi: (b, qi, 0)),
            scratch_shapes=scratch_shapes,
        ),
        compiler_params=pltpu.CompilerParams(
            # qi must iterate sequentially when nq > 1 so the K/V cache trick is
            # valid; batch axis carries the (megacore) parallelism.
            dimension_semantics=("parallel", "parallel" if single else "arbitrary"),
            vmem_limit_bytes=vmem_limit,
        ),
        cost_estimate=cost,
    )(
        *x_args,
        params["wqkv"], params["bqkv"],
        params["wo"], params["bo"],
        params["g1"], params["be1"],
        params["w1"], params["b1"],
        params["w2"], params["b2"],
        params["g2"], params["be2"],
    )
    return out


def init_params(key, embed_dim, mlp_dim, num_heads):
    """Deterministic synthetic init.  Matmul weights pre-transposed (x @ W) and
    stored in bf16; biases & LN params f32.  The 1/sqrt(head_dim) attention scale
    is folded into the Q columns of wqkv/bqkv (equivalent to PyTorch applying it
    inside nn.MultiheadAttention)."""
    ks = jax.random.split(key, 4)
    s = 0.02
    E, M = embed_dim, mlp_dim
    Dh = E // num_heads
    bf16, f32 = jnp.bfloat16, jnp.float32

    wqkv = s * jax.random.normal(ks[0], (E, 3 * E), f32)
    q_scale = 1.0 / (Dh ** 0.5)
    wqkv = wqkv.at[:, :E].multiply(q_scale)
    bqkv = jnp.zeros((1, 3 * E), f32).at[:, :E].multiply(q_scale)

    return {
        # fused attention in-projection (q | k | v), q columns pre-scaled
        "wqkv": wqkv.astype(bf16),
        "bqkv": bqkv,
        # attention out-projection
        "wo": (s * jax.random.normal(ks[1], (E, E), f32)).astype(bf16),
        "bo": jnp.zeros((1, E), f32),
        # LayerNorm 1
        "g1": jnp.ones((1, E), f32),
        "be1": jnp.zeros((1, E), f32),
        # MLP
        "w1": (s * jax.random.normal(ks[2], (E, M), f32)).astype(bf16),
        "b1": jnp.zeros((1, M), f32),
        "w2": (s * jax.random.normal(ks[3], (M, E), f32)).astype(bf16),
        "b2": jnp.zeros((1, E), f32),
        # LayerNorm 2
        "g2": jnp.ones((1, E), f32),
        "be2": jnp.zeros((1, E), f32),
    }


def _reference(x, p, num_heads):
    """Pure-JAX reference mirroring the kernel's bf16-matmul / f32-elementwise
    numerics (PyTorch eval-mode forward; eps=1e-6; q-scale already folded into
    the params by init_params)."""
    B, S, E = x.shape
    Dh = E // num_heads
    f32 = jnp.float32
    bf = lambda a: a.astype(jnp.bfloat16)

    def ln(y, g, b):
        mu = jnp.mean(y, -1, keepdims=True)
        var = jnp.mean((y - mu) ** 2, -1, keepdims=True)
        return (y - mu) / jnp.sqrt(var + 1e-6) * g + b

    qkv = jnp.einsum("bse,ef->bsf", bf(x), p["wqkv"],
                     preferred_element_type=f32) + p["bqkv"]
    q, k, v = qkv[..., :E], qkv[..., E:2 * E], qkv[..., 2 * E:]

    def heads(t):
        return t.reshape(B, S, num_heads, Dh).transpose(0, 2, 1, 3)

    qh, kh, vh = heads(q), heads(k), heads(v)
    s = jnp.einsum("bhqd,bhkd->bhqk", bf(qh), bf(kh), preferred_element_type=f32)
    a = jax.nn.softmax(s, axis=-1)
    o = jnp.einsum("bhqk,bhkd->bhqd", bf(a), bf(vh), preferred_element_type=f32)
    o = o.transpose(0, 2, 1, 3).reshape(B, S, E)
    o = jnp.einsum("bse,ef->bsf", bf(o), p["wo"],
                   preferred_element_type=f32) + p["bo"]
    out1 = ln(x + o, p["g1"], p["be1"])
    h1 = jnp.maximum(jnp.einsum("bse,em->bsm", bf(out1), p["w1"],
                                preferred_element_type=f32) + p["b1"], 0.0)
    h2 = jnp.einsum("bsm,me->bse", bf(h1), p["w2"],
                    preferred_element_type=f32) + p["b2"]
    return ln(out1 + h2, p["g2"], p["be2"])


if __name__ == "__main__":
    key = jax.random.PRNGKey(0)

    # Case 1: single query tile (the common ViT configuration, tq == S).
    B, S, E, H, M = 2, 8, 32, 4, 64
    kx, kp = jax.random.split(key)
    x = jax.random.normal(kx, (B, S, E), jnp.float32)
    params = init_params(kp, E, M, H)
    out = jax.block_until_ready(transformer_block(x, params, num_heads=H))
    ref = _reference(x, params, H)
    err = float(jnp.max(jnp.abs(out - ref)))
    assert out.shape == (B, S, E), f"bad shape {out.shape}"
    assert err < 3e-2, f"single-tile mismatch vs reference: {err}"

    # Case 2: query-tiled path (exercises the hoisted K/V projection / pl.when).
    S2 = 16
    kx2, kp2 = jax.random.split(kp)
    x2 = jax.random.normal(kx2, (B, S2, E), jnp.float32)
    params2 = init_params(kp2, E, M, H)
    out2 = jax.block_until_ready(
        transformer_block(x2, params2, num_heads=H, q_block=8))
    ref2 = _reference(x2, params2, H)
    err2 = float(jnp.max(jnp.abs(out2 - ref2)))
    assert out2.shape == (B, S2, E), f"bad shape {out2.shape}"
    assert err2 < 3e-2, f"tiled mismatch vs reference: {err2}"

    print("KERNEL_OK")
</pallas_src>

<mosaic_0001>
module attributes {stable_mosaic.version = 11 : i64} {
  func.func @kernel(%arg0: i32, %arg1: i32, %arg2: memref<1x8x32xf32, #tpu.memory_space<vmem>>, %arg3: memref<32x96xbf16, #tpu.memory_space<vmem>>, %arg4: memref<1x96xf32, #tpu.memory_space<vmem>>, %arg5: memref<32x32xbf16, #tpu.memory_space<vmem>>, %arg6: memref<1x32xf32, #tpu.memory_space<vmem>>, %arg7: memref<1x32xf32, #tpu.memory_space<vmem>>, %arg8: memref<1x32xf32, #tpu.memory_space<vmem>>, %arg9: memref<32x64xbf16, #tpu.memory_space<vmem>>, %arg10: memref<1x64xf32, #tpu.memory_space<vmem>>, %arg11: memref<64x32xbf16, #tpu.memory_space<vmem>>, %arg12: memref<1x32xf32, #tpu.memory_space<vmem>>, %arg13: memref<1x32xf32, #tpu.memory_space<vmem>>, %arg14: memref<1x32xf32, #tpu.memory_space<vmem>>, %arg15: memref<1x8x32xf32, #tpu.memory_space<vmem>>, %arg16: memref<4x8x8xbf16, #tpu.memory_space<vmem>>, %arg17: memref<4x8x8xbf16, #tpu.memory_space<vmem>>, %arg18: memref<4x8x8xbf16, #tpu.memory_space<vmem>>, %arg19: memref<8x32xbf16, #tpu.memory_space<vmem>>) attributes {dimension_semantics = [#tpu.dimension_semantics<parallel>, #tpu.dimension_semantics<parallel>], iteration_bounds = array<i64: 2, 1>, scalar_prefetch = 0 : i64, scratch_operands = 4 : i64, tpu.core_type = #tpu.core_type<tc>, window_params = [{transform_indices = @transform_0, window_bounds = array<i64: 1, 8, 32>}, {pipeline_mode = #tpu.pipeline_mode<synchronous>, transform_indices = @transform_1, window_bounds = array<i64: 32, 96>}, {pipeline_mode = #tpu.pipeline_mode<synchronous>, transform_indices = @transform_2, window_bounds = array<i64: 1, 96>}, {pipeline_mode = #tpu.pipeline_mode<synchronous>, transform_indices = @transform_3, window_bounds = array<i64: 32, 32>}, {pipeline_mode = #tpu.pipeline_mode<synchronous>, transform_indices = @transform_4, window_bounds = array<i64: 1, 32>}, {pipeline_mode = #tpu.pipeline_mode<synchronous>, transform_indices = @transform_5, window_bounds = array<i64: 1, 32>}, {pipeline_mode = #tpu.pipeline_mode<synchronous>, transform_indices = @transform_6, window_bounds = array<i64: 1, 32>}, {pipeline_mode = #tpu.pipeline_mode<synchronous>, transform_indices = @transform_7, window_bounds = array<i64: 32, 64>}, {pipeline_mode = #tpu.pipeline_mode<synchronous>, transform_indices = @transform_8, window_bounds = array<i64: 1, 64>}, {pipeline_mode = #tpu.pipeline_mode<synchronous>, transform_indices = @transform_9, window_bounds = array<i64: 64, 32>}, {pipeline_mode = #tpu.pipeline_mode<synchronous>, transform_indices = @transform_10, window_bounds = array<i64: 1, 32>}, {pipeline_mode = #tpu.pipeline_mode<synchronous>, transform_indices = @transform_11, window_bounds = array<i64: 1, 32>}, {pipeline_mode = #tpu.pipeline_mode<synchronous>, transform_indices = @transform_12, window_bounds = array<i64: 1, 32>}, {transform_indices = @transform_13, window_bounds = array<i64: 1, 8, 32>}]} {
    %c0 = arith.constant 0 : index
    %c0_0 = arith.constant 0 : index
    %c0_1 = arith.constant 0 : index
    %0 = vector.load %arg2[%c0, %c0_0, %c0_1] : memref<1x8x32xf32, #tpu.memory_space<vmem>>, vector<1x8x32xf32>
    %1 = vector.shape_cast %0 : vector<1x8x32xf32> to vector<8x32xf32>
    %2 = arith.truncf %1 : vector<8x32xf32> to vector<8x32xbf16>
    %c0_2 = arith.constant 0 : index
    %c0_3 = arith.constant 0 : index
    %3 = vector.load %arg3[%c0_2, %c0_3] : memref<32x96xbf16, #tpu.memory_space<vmem>>, vector<32x96xbf16>
    %cst = arith.constant dense<0.000000e+00> : vector<8x96xf32>
    %4 = tpu.matmul %2, %3, %cst {dimension_numbers = #tpu.dot_dimension_numbers<[1], [0], [0], [1], [0, 0, 1, 1], [], []>} : vector<8x32xbf16>, vector<32x96xbf16>, vector<8x96xf32> -> vector<8x96xf32>
    %c0_4 = arith.constant 0 : index
    %c0_5 = arith.constant 0 : index
    %5 = vector.load %arg4[%c0_4, %c0_5] : memref<1x96xf32, #tpu.memory_space<vmem>>, vector<1x96xf32>
    %6 = vector.broadcast %5 : vector<1x96xf32> to vector<8x96xf32>
    %7 = arith.addf %4, %6 : vector<8x96xf32>
    %8 = vector.extract_strided_slice %7 {offsets = [0, 0], sizes = [8, 32], strides = [1, 1]} : vector<8x96xf32> to vector<8x32xf32>
    %9 = vector.extract_strided_slice %7 {offsets = [0, 32], sizes = [8, 32], strides = [1, 1]} : vector<8x96xf32> to vector<8x32xf32>
    %10 = vector.extract_strided_slice %7 {offsets = [0, 64], sizes = [8, 32], strides = [1, 1]} : vector<8x96xf32> to vector<8x32xf32>
    %11 = vector.extract_strided_slice %9 {offsets = [0, 0], sizes = [8, 8], strides = [1, 1]} : vector<8x32xf32> to vector<8x8xf32>
    %12 = arith.truncf %11 : vector<8x8xf32> to vector<8x8xbf16>
    %c0_6 = arith.constant 0 : index
    %c0_7 = arith.constant 0 : index
    %c0_8 = arith.constant 0 : index
    %13 = vector.load %arg17[%c0_6, %c0_7, %c0_8] : memref<4x8x8xbf16, #tpu.memory_space<vmem>>, vector<1x8x8xbf16>
    %14 = vector.shape_cast %13 : vector<1x8x8xbf16> to vector<8x8xbf16>
    %15 = vector.shape_cast %12 : vector<8x8xbf16> to vector<1x8x8xbf16>
    tpu.vector_store %arg17[%c0_6, %c0_7, %c0_8], %15 {strides = array<i32>} : memref<4x8x8xbf16, #tpu.memory_space<vmem>>, vector<1x8x8xbf16>,
    %16 = vector.extract_strided_slice %10 {offsets = [0, 0], sizes = [8, 8], strides = [1, 1]} : vector<8x32xf32> to vector<8x8xf32>
    %17 = arith.truncf %16 : vector<8x8xf32> to vector<8x8xbf16>
    %c0_9 = arith.constant 0 : index
    %c0_10 = arith.constant 0 : index
    %c0_11 = arith.constant 0 : index
    %18 = vector.load %arg18[%c0_9, %c0_10, %c0_11] : memref<4x8x8xbf16, #tpu.memory_space<vmem>>, vector<1x8x8xbf16>
    %19 = vector.shape_cast %18 : vector<1x8x8xbf16> to vector<8x8xbf16>
    %20 = vector.shape_cast %17 : vector<8x8xbf16> to vector<1x8x8xbf16>
    tpu.vector_store %arg18[%c0_9, %c0_10, %c0_11], %20 {strides = array<i32>} : memref<4x8x8xbf16, #tpu.memory_space<vmem>>, vector<1x8x8xbf16>,
    %21 = vector.extract_strided_slice %9 {offsets = [0, 8], sizes = [8, 8], strides = [1, 1]} : vector<8x32xf32> to vector<8x8xf32>
    %22 = arith.truncf %21 : vector<8x8xf32> to vector<8x8xbf16>
    %c1 = arith.constant 1 : index
    %c0_12 = arith.constant 0 : index
    %c0_13 = arith.constant 0 : index
    %23 = vector.load %arg17[%c1, %c0_12, %c0_13] : memref<4x8x8xbf16, #tpu.memory_space<vmem>>, vector<1x8x8xbf16>
    %24 = vector.shape_cast %23 : vector<1x8x8xbf16> to vector<8x8xbf16>
    %25 = vector.shape_cast %22 : vector<8x8xbf16> to vector<1x8x8xbf16>
    tpu.vector_store %arg17[%c1, %c0_12, %c0_13], %25 {strides = array<i32>} : memref<4x8x8xbf16, #tpu.memory_space<vmem>>, vector<1x8x8xbf16>,
    %26 = vector.extract_strided_slice %10 {offsets = [0, 8], sizes = [8, 8], strides = [1, 1]} : vector<8x32xf32> to vector<8x8xf32>
    %27 = arith.truncf %26 : vector<8x8xf32> to vector<8x8xbf16>
    %c1_14 = arith.constant 1 : index
    %c0_15 = arith.constant 0 : index
    %c0_16 = arith.constant 0 : index
    %28 = vector.load %arg18[%c1_14, %c0_15, %c0_16] : memref<4x8x8xbf16, #tpu.memory_space<vmem>>, vector<1x8x8xbf16>
    %29 = vector.shape_cast %28 : vector<1x8x8xbf16> to vector<8x8xbf16>
    %30 = vector.shape_cast %27 : vector<8x8xbf16> to vector<1x8x8xbf16>
    tpu.vector_store %arg18[%c1_14, %c0_15, %c0_16], %30 {strides = array<i32>} : memref<4x8x8xbf16, #tpu.memory_space<vmem>>, vector<1x8x8xbf16>,
    %31 = vector.extract_strided_slice %9 {offsets = [0, 16], sizes = [8, 8], strides = [1, 1]} : vector<8x32xf32> to vector<8x8xf32>
    %32 = arith.truncf %31 : vector<8x8xf32> to vector<8x8xbf16>
    %c2 = arith.constant 2 : index
    %c0_17 = arith.constant 0 : index
    %c0_18 = arith.constant 0 : index
    %33 = vector.load %arg17[%c2, %c0_17, %c0_18] : memref<4x8x8xbf16, #tpu.memory_space<vmem>>, vector<1x8x8xbf16>
    %34 = vector.shape_cast %33 : vector<1x8x8xbf16> to vector<8x8xbf16>
    %35 = vector.shape_cast %32 : vector<8x8xbf16> to vector<1x8x8xbf16>
    tpu.vector_store %arg17[%c2, %c0_17, %c0_18], %35 {strides = array<i32>} : memref<4x8x8xbf16, #tpu.memory_space<vmem>>, vector<1x8x8xbf16>,
    %36 = vector.extract_strided_slice %10 {offsets = [0, 16], sizes = [8, 8], strides = [1, 1]} : vector<8x32xf32> to vector<8x8xf32>
    %37 = arith.truncf %36 : vector<8x8xf32> to vector<8x8xbf16>
    %c2_19 = arith.constant 2 : index
    %c0_20 = arith.constant 0 : index
    %c0_21 = arith.constant 0 : index
    %38 = vector.load %arg18[%c2_19, %c0_20, %c0_21] : memref<4x8x8xbf16, #tpu.memory_space<vmem>>, vector<1x8x8xbf16>
    %39 = vector.shape_cast %38 : vector<1x8x8xbf16> to vector<8x8xbf16>
    %40 = vector.shape_cast %37 : vector<8x8xbf16> to vector<1x8x8xbf16>
    tpu.vector_store %arg18[%c2_19, %c0_20, %c0_21], %40 {strides = array<i32>} : memref<4x8x8xbf16, #tpu.memory_space<vmem>>, vector<1x8x8xbf16>,
    %41 = vector.extract_strided_slice %9 {offsets = [0, 24], sizes = [8, 8], strides = [1, 1]} : vector<8x32xf32> to vector<8x8xf32>
    %42 = arith.truncf %41 : vector<8x8xf32> to vector<8x8xbf16>
    %c3 = arith.constant 3 : index
    %c0_22 = arith.constant 0 : index
    %c0_23 = arith.constant 0 : index
    %43 = vector.load %arg17[%c3, %c0_22, %c0_23] : memref<4x8x8xbf16, #tpu.memory_space<vmem>>, vector<1x8x8xbf16>
    %44 = vector.shape_cast %43 : vector<1x8x8xbf16> to vector<8x8xbf16>
    %45 = vector.shape_cast %42 : vector<8x8xbf16> to vector<1x8x8xbf16>
    tpu.vector_store %arg17[%c3, %c0_22, %c0_23], %45 {strides = array<i32>} : memref<4x8x8xbf16, #tpu.memory_space<vmem>>, vector<1x8x8xbf16>,
    %46 = vector.extract_strided_slice %10 {offsets = [0, 24], sizes = [8, 8], strides = [1, 1]} : vector<8x32xf32> to vector<8x8xf32>
    %47 = arith.truncf %46 : vector<8x8xf32> to vector<8x8xbf16>
    %c3_24 = arith.constant 3 : index
    %c0_25 = arith.constant 0 : index
    %c0_26 = arith.constant 0 : index
    %48 = vector.load %arg18[%c3_24, %c0_25, %c0_26] : memref<4x8x8xbf16, #tpu.memory_space<vmem>>, vector<1x8x8xbf16>
    %49 = vector.shape_cast %48 : vector<1x8x8xbf16> to vector<8x8xbf16>
    %50 = vector.shape_cast %47 : vector<8x8xbf16> to vector<1x8x8xbf16>
    tpu.vector_store %arg18[%c3_24, %c0_25, %c0_26], %50 {strides = array<i32>} : memref<4x8x8xbf16, #tpu.memory_space<vmem>>, vector<1x8x8xbf16>,
    %51 = vector.extract_strided_slice %8 {offsets = [0, 0], sizes = [8, 8], strides = [1, 1]} : vector<8x32xf32> to vector<8x8xf32>
    %52 = arith.truncf %51 : vector<8x8xf32> to vector<8x8xbf16>
    %c0_27 = arith.constant 0 : index
    %c0_28 = arith.constant 0 : index
    %c0_29 = arith.constant 0 : index
    %53 = vector.load %arg16[%c0_27, %c0_28, %c0_29] : memref<4x8x8xbf16, #tpu.memory_space<vmem>>, vector<1x8x8xbf16>
    %54 = vector.shape_cast %53 : vector<1x8x8xbf16> to vector<8x8xbf16>
    %55 = vector.shape_cast %52 : vector<8x8xbf16> to vector<1x8x8xbf16>
    tpu.vector_store %arg16[%c0_27, %c0_28, %c0_29], %55 {strides = array<i32>} : memref<4x8x8xbf16, #tpu.memory_space<vmem>>, vector<1x8x8xbf16>,
    %56 = vector.extract_strided_slice %8 {offsets = [0, 8], sizes = [8, 8], strides = [1, 1]} : vector<8x32xf32> to vector<8x8xf32>
    %57 = arith.truncf %56 : vector<8x8xf32> to vector<8x8xbf16>
    %c1_30 = arith.constant 1 : index
    %c0_31 = arith.constant 0 : index
    %c0_32 = arith.constant 0 : index
    %58 = vector.load %arg16[%c1_30, %c0_31, %c0_32] : memref<4x8x8xbf16, #tpu.memory_space<vmem>>, vector<1x8x8xbf16>
    %59 = vector.shape_cast %58 : vector<1x8x8xbf16> to vector<8x8xbf16>
    %60 = vector.shape_cast %57 : vector<8x8xbf16> to vector<1x8x8xbf16>
    tpu.vector_store %arg16[%c1_30, %c0_31, %c0_32], %60 {strides = array<i32>} : memref<4x8x8xbf16, #tpu.memory_space<vmem>>, vector<1x8x8xbf16>,
    %61 = vector.extract_strided_slice %8 {offsets = [0, 16], sizes = [8, 8], strides = [1, 1]} : vector<8x32xf32> to vector<8x8xf32>
    %62 = arith.truncf %61 : vector<8x8xf32> to vector<8x8xbf16>
    %c2_33 = arith.constant 2 : index
    %c0_34 = arith.constant 0 : index
    %c0_35 = arith.constant 0 : index
    %63 = vector.load %arg16[%c2_33, %c0_34, %c0_35] : memref<4x8x8xbf16, #tpu.memory_space<vmem>>, vector<1x8x8xbf16>
    %64 = vector.shape_cast %63 : vector<1x8x8xbf16> to vector<8x8xbf16>
    %65 = vector.shape_cast %62 : vector<8x8xbf16> to vector<1x8x8xbf16>
    tpu.vector_store %arg16[%c2_33, %c0_34, %c0_35], %65 {strides = array<i32>} : memref<4x8x8xbf16, #tpu.memory_space<vmem>>, vector<1x8x8xbf16>,
    %66 = vector.extract_strided_slice %8 {offsets = [0, 24], sizes = [8, 8], strides = [1, 1]} : vector<8x32xf32> to vector<8x8xf32>
    %67 = arith.truncf %66 : vector<8x8xf32> to vector<8x8xbf16>
    %c3_36 = arith.constant 3 : index
    %c0_37 = arith.constant 0 : index
    %c0_38 = arith.constant 0 : index
    %68 = vector.load %arg16[%c3_36, %c0_37, %c0_38] : memref<4x8x8xbf16, #tpu.memory_space<vmem>>, vector<1x8x8xbf16>
    %69 = vector.shape_cast %68 : vector<1x8x8xbf16> to vector<8x8xbf16>
    %70 = vector.shape_cast %67 : vector<8x8xbf16> to vector<1x8x8xbf16>
    tpu.vector_store %arg16[%c3_36, %c0_37, %c0_38], %70 {strides = array<i32>} : memref<4x8x8xbf16, #tpu.memory_space<vmem>>, vector<1x8x8xbf16>,
    %c0_39 = arith.constant 0 : index
    %c0_40 = arith.constant 0 : index
    %c0_41 = arith.constant 0 : index
    %71 = vector.load %arg16[%c0_39, %c0_40, %c0_41] : memref<4x8x8xbf16, #tpu.memory_space<vmem>>, vector<4x8x8xbf16>
    %c0_42 = arith.constant 0 : index
    %c0_43 = arith.constant 0 : index
    %c0_44 = arith.constant 0 : index
    %72 = vector.load %arg17[%c0_42, %c0_43, %c0_44] : memref<4x8x8xbf16, #tpu.memory_space<vmem>>, vector<4x8x8xbf16>
    "tpu.trace_start"() <{level = 10 : i32, message = "hqd,hkd->hqk"}> : () -> ()
    %cst_45 = arith.constant dense<0.000000e+00> : vector<4x8x8xf32>
    %73 = tpu.matmul %71, %72, %cst_45 {dimension_numbers = #tpu.dot_dimension_numbers<[2], [2], [1], [1], [0, 0, 0, 1, 1, 1], [0], [0]>} : vector<4x8x8xbf16>, vector<4x8x8xbf16>, vector<4x8x8xf32> -> vector<4x8x8xf32>
    "tpu.trace_stop"() : () -> ()
    %cst_46 = arith.constant dense<0xFF800000> : vector<4x8xf32>
    %74 = vector.multi_reduction <maximumf>, %73, %cst_46 [2] : vector<4x8x8xf32> to vector<4x8xf32>
    %75 = vector.shape_cast %74 : vector<4x8xf32> to vector<4x8x1xf32>
    %76 = vector.broadcast %75 : vector<4x8x1xf32> to vector<4x8x8xf32>
    %77 = arith.subf %73, %76 : vector<4x8x8xf32>
    %78 = math.exp %77 : vector<4x8x8xf32>
    %cst_47 = arith.constant dense<0.000000e+00> : vector<4x8xf32>
    %79 = vector.multi_reduction <add>, %78, %cst_47 [2] : vector<4x8x8xf32> to vector<4x8xf32>
    %80 = vector.shape_cast %79 : vector<4x8xf32> to vector<4x8x1xf32>
    %81 = tpu.reciprocal %80 {approx = true} : vector<4x8x1xf32> -> vector<4x8x1xf32>
    %82 = vector.broadcast %81 : vector<4x8x1xf32> to vector<4x8x8xf32>
    %83 = arith.mulf %78, %82 : vector<4x8x8xf32>
    %84 = arith.truncf %83 : vector<4x8x8xf32> to vector<4x8x8xbf16>
    %c0_48 = arith.constant 0 : index
    %c0_49 = arith.constant 0 : index
    %c0_50 = arith.constant 0 : index
    %85 = vector.load %arg18[%c0_48, %c0_49, %c0_50] : memref<4x8x8xbf16, #tpu.memory_space<vmem>>, vector<4x8x8xbf16>
    "tpu.trace_start"() <{level = 10 : i32, message = "hqk,hkd->hqd"}> : () -> ()
    %cst_51 = arith.constant dense<0.000000e+00> : vector<4x8x8xf32>
    %86 = tpu.matmul %84, %85, %cst_51 {dimension_numbers = #tpu.dot_dimension_numbers<[2], [1], [1], [2], [0, 0, 0, 1, 1, 2], [0], [0]>} : vector<4x8x8xbf16>, vector<4x8x8xbf16>, vector<4x8x8xf32> -> vector<4x8x8xf32>
    "tpu.trace_stop"() : () -> ()
    %87 = vector.extract_strided_slice %86 {offsets = [0, 0, 0], sizes = [1, 8, 8], strides = [1, 1, 1]} : vector<4x8x8xf32> to vector<1x8x8xf32>
    %88 = vector.shape_cast %87 : vector<1x8x8xf32> to vector<8x8xf32>
    %89 = arith.truncf %88 : vector<8x8xf32> to vector<8x8xbf16>
    %c0_52 = arith.constant 0 : index
    %c0_53 = arith.constant 0 : index
    %90 = vector.load %arg19[%c0_52, %c0_53] : memref<8x32xbf16, #tpu.memory_space<vmem>>, vector<8x8xbf16>
    tpu.vector_store %arg19[%c0_52, %c0_53], %89 {strides = array<i32>} : memref<8x32xbf16, #tpu.memory_space<vmem>>, vector<8x8xbf16>,
    %91 = vector.extract_strided_slice %86 {offsets = [1, 0, 0], sizes = [1, 8, 8], strides = [1, 1, 1]} : vector<4x8x8xf32> to vector<1x8x8xf32>
    %92 = vector.shape_cast %91 : vector<1x8x8xf32> to vector<8x8xf32>
    %93 = arith.truncf %92 : vector<8x8xf32> to vector<8x8xbf16>
    %c0_54 = arith.constant 0 : index
    %c8 = arith.constant 8 : index
    %94 = vector.load %arg19[%c0_54, %c8] : memref<8x32xbf16, #tpu.memory_space<vmem>>, vector<8x8xbf16>
    tpu.vector_store %arg19[%c0_54, %c8], %93 {strides = array<i32>} : memref<8x32xbf16, #tpu.memory_space<vmem>>, vector<8x8xbf16>,
    %95 = vector.extract_strided_slice %86 {offsets = [2, 0, 0], sizes = [1, 8, 8], strides = [1, 1, 1]} : vector<4x8x8xf32> to vector<1x8x8xf32>
    %96 = vector.shape_cast %95 : vector<1x8x8xf32> to vector<8x8xf32>
    %97 = arith.truncf %96 : vector<8x8xf32> to vector<8x8xbf16>
    %c0_55 = arith.constant 0 : index
    %c16 = arith.constant 16 : index
    %98 = vector.load %arg19[%c0_55, %c16] : memref<8x32xbf16, #tpu.memory_space<vmem>>, vector<8x8xbf16>
    tpu.vector_store %arg19[%c0_55, %c16], %97 {strides = array<i32>} : memref<8x32xbf16, #tpu.memory_space<vmem>>, vector<8x8xbf16>,
    %99 = vector.extract_strided_slice %86 {offsets = [3, 0, 0], sizes = [1, 8, 8], strides = [1, 1, 1]} : vector<4x8x8xf32> to vector<1x8x8xf32>
    %100 = vector.shape_cast %99 : vector<1x8x8xf32> to vector<8x8xf32>
    %101 = arith.truncf %100 : vector<8x8xf32> to vector<8x8xbf16>
    %c0_56 = arith.constant 0 : index
    %c24 = arith.constant 24 : index
    %102 = vector.load %arg19[%c0_56, %c24] : memref<8x32xbf16, #tpu.memory_space<vmem>>, vector<8x8xbf16>
    tpu.vector_store %arg19[%c0_56, %c24], %101 {strides = array<i32>} : memref<8x32xbf16, #tpu.memory_space<vmem>>, vector<8x8xbf16>,
    %c0_57 = arith.constant 0 : index
    %c0_58 = arith.constant 0 : index
    %103 = vector.load %arg19[%c0_57, %c0_58] : memref<8x32xbf16, #tpu.memory_space<vmem>>, vector<8x32xbf16>
    %c0_59 = arith.constant 0 : index
    %c0_60 = arith.constant 0 : index
    %104 = vector.load %arg5[%c0_59, %c0_60] : memref<32x32xbf16, #tpu.memory_space<vmem>>, vector<32x32xbf16>
    %cst_61 = arith.constant dense<0.000000e+00> : vector<8x32xf32>
    %105 = tpu.matmul %103, %104, %cst_61 {dimension_numbers = #tpu.dot_dimension_numbers<[1], [0], [0], [1], [0, 0, 1, 1], [], []>} : vector<8x32xbf16>, vector<32x32xbf16>, vector<8x32xf32> -> vector<8x32xf32>
    %c0_62 = arith.constant 0 : index
    %c0_63 = arith.constant 0 : index
    %106 = vector.load %arg6[%c0_62, %c0_63] : memref<1x32xf32, #tpu.memory_space<vmem>>, vector<1x32xf32>
    %107 = vector.broadcast %106 : vector<1x32xf32> to vector<8x32xf32>
    %108 = arith.addf %105, %107 : vector<8x32xf32>
    %109 = arith.addf %1, %108 : vector<8x32xf32>
    %c0_64 = arith.constant 0 : index
    %c0_65 = arith.constant 0 : index
    %110 = vector.load %arg7[%c0_64, %c0_65] : memref<1x32xf32, #tpu.memory_space<vmem>>, vector<1x32xf32>
    %c0_66 = arith.constant 0 : index
    %c0_67 = arith.constant 0 : index
    %111 = vector.load %arg8[%c0_66, %c0_67] : memref<1x32xf32, #tpu.memory_space<vmem>>, vector<1x32xf32>
    %cst_68 = arith.constant dense<0.000000e+00> : vector<8xf32>
    %112 = vector.multi_reduction <add>, %109, %cst_68 [1] : vector<8x32xf32> to vector<8xf32>
    %113 = vector.shape_cast %112 : vector<8xf32> to vector<8x1xf32>
    %cst_69 = arith.constant 3.200000e+01 : f32
    %114 = vector.broadcast %cst_69 : f32 to vector<8x1xf32>
    %115 = arith.divf %113, %114 : vector<8x1xf32>
    %116 = vector.broadcast %115 : vector<8x1xf32> to vector<8x32xf32>
    %117 = arith.subf %109, %116 : vector<8x32xf32>
    %118 = vector.broadcast %115 : vector<8x1xf32> to vector<8x32xf32>
    %119 = arith.subf %109, %118 : vector<8x32xf32>
    %120 = arith.mulf %117, %119 : vector<8x32xf32>
    %cst_70 = arith.constant dense<0.000000e+00> : vector<8xf32>
    %121 = vector.multi_reduction <add>, %120, %cst_70 [1] : vector<8x32xf32> to vector<8xf32>
    %122 = vector.shape_cast %121 : vector<8xf32> to vector<8x1xf32>
    %cst_71 = arith.constant 3.200000e+01 : f32
    %123 = vector.broadcast %cst_71 : f32 to vector<8x1xf32>
    %124 = arith.divf %122, %123 : vector<8x1xf32>
    %125 = vector.broadcast %115 : vector<8x1xf32> to vector<8x32xf32>
    %126 = arith.subf %109, %125 : vector<8x32xf32>
    %cst_72 = arith.constant 9.99999997E-7 : f32
    %127 = vector.broadcast %cst_72 : f32 to vector<8x1xf32>
    %128 = arith.addf %124, %127 : vector<8x1xf32>
    %129 = math.rsqrt %128 : vector<8x1xf32>
    %130 = vector.broadcast %129 : vector<8x1xf32> to vector<8x32xf32>
    %131 = arith.mulf %126, %130 : vector<8x32xf32>
    %132 = vector.broadcast %110 : vector<1x32xf32> to vector<8x32xf32>
    %133 = arith.mulf %131, %132 : vector<8x32xf32>
    %134 = vector.broadcast %111 : vector<1x32xf32> to vector<8x32xf32>
    %135 = arith.addf %133, %134 : vector<8x32xf32>
    %136 = arith.truncf %135 : vector<8x32xf32> to vector<8x32xbf16>
    %c0_73 = arith.constant 0 : index
    %c0_74 = arith.constant 0 : index
    %137 = vector.load %arg9[%c0_73, %c0_74] : memref<32x64xbf16, #tpu.memory_space<vmem>>, vector<32x64xbf16>
    %cst_75 = arith.constant dense<0.000000e+00> : vector<8x64xf32>
    %138 = tpu.matmul %136, %137, %cst_75 {dimension_numbers = #tpu.dot_dimension_numbers<[1], [0], [0], [1], [0, 0, 1, 1], [], []>} : vector<8x32xbf16>, vector<32x64xbf16>, vector<8x64xf32> -> vector<8x64xf32>
    %c0_76 = arith.constant 0 : index
    %c0_77 = arith.constant 0 : index
    %139 = vector.load %arg10[%c0_76, %c0_77] : memref<1x64xf32, #tpu.memory_space<vmem>>, vector<1x64xf32>
    %140 = vector.broadcast %139 : vector<1x64xf32> to vector<8x64xf32>
    %141 = arith.addf %138, %140 : vector<8x64xf32>
    %cst_78 = arith.constant 0.000000e+00 : f32
    %142 = vector.broadcast %cst_78 : f32 to vector<8x64xf32>
    %143 = arith.maximumf %141, %142 : vector<8x64xf32>
    %144 = arith.truncf %143 : vector<8x64xf32> to vector<8x64xbf16>
    %c0_79 = arith.constant 0 : index
    %c0_80 = arith.constant 0 : index
    %145 = vector.load %arg11[%c0_79, %c0_80] : memref<64x32xbf16, #tpu.memory_space<vmem>>, vector<64x32xbf16>
    %cst_81 = arith.constant dense<0.000000e+00> : vector<8x32xf32>
    %146 = tpu.matmul %144, %145, %cst_81 {dimension_numbers = #tpu.dot_dimension_numbers<[1], [0], [0], [1], [0, 0, 1, 1], [], []>} : vector<8x64xbf16>, vector<64x32xbf16>, vector<8x32xf32> -> vector<8x32xf32>
    %c0_82 = arith.constant 0 : index
    %c0_83 = arith.constant 0 : index
    %147 = vector.load %arg12[%c0_82, %c0_83] : memref<1x32xf32, #tpu.memory_space<vmem>>, vector<1x32xf32>
    %148 = vector.broadcast %147 : vector<1x32xf32> to vector<8x32xf32>
    %149 = arith.addf %146, %148 : vector<8x32xf32>
    %150 = arith.addf %135, %149 : vector<8x32xf32>
    %c0_84 = arith.constant 0 : index
    %c0_85 = arith.constant 0 : index
    %151 = vector.load %arg13[%c0_84, %c0_85] : memref<1x32xf32, #tpu.memory_space<vmem>>, vector<1x32xf32>
    %c0_86 = arith.constant 0 : index
    %c0_87 = arith.constant 0 : index
    %152 = vector.load %arg14[%c0_86, %c0_87] : memref<1x32xf32, #tpu.memory_space<vmem>>, vector<1x32xf32>
    %cst_88 = arith.constant dense<0.000000e+00> : vector<8xf32>
    %153 = vector.multi_reduction <add>, %150, %cst_88 [1] : vector<8x32xf32> to vector<8xf32>
    %154 = vector.shape_cast %153 : vector<8xf32> to vector<8x1xf32>
    %cst_89 = arith.constant 3.200000e+01 : f32
    %155 = vector.broadcast %cst_89 : f32 to vector<8x1xf32>
    %156 = arith.divf %154, %155 : vector<8x1xf32>
    %157 = vector.broadcast %156 : vector<8x1xf32> to vector<8x32xf32>
    %158 = arith.subf %150, %157 : vector<8x32xf32>
    %159 = vector.broadcast %156 : vector<8x1xf32> to vector<8x32xf32>
    %160 = arith.subf %150, %159 : vector<8x32xf32>
    %161 = arith.mulf %158, %160 : vector<8x32xf32>
    %cst_90 = arith.constant dense<0.000000e+00> : vector<8xf32>
    %162 = vector.multi_reduction <add>, %161, %cst_90 [1] : vector<8x32xf32> to vector<8xf32>
    %163 = vector.shape_cast %162 : vector<8xf32> to vector<8x1xf32>
    %cst_91 = arith.constant 3.200000e+01 : f32
    %164 = vector.broadcast %cst_91 : f32 to vector<8x1xf32>
    %165 = arith.divf %163, %164 : vector<8x1xf32>
    %166 = vector.broadcast %156 : vector<8x1xf32> to vector<8x32xf32>
    %167 = arith.subf %150, %166 : vector<8x32xf32>
    %cst_92 = arith.constant 9.99999997E-7 : f32
    %168 = vector.broadcast %cst_92 : f32 to vector<8x1xf32>
    %169 = arith.addf %165, %168 : vector<8x1xf32>
    %170 = math.rsqrt %169 : vector<8x1xf32>
    %171 = vector.broadcast %170 : vector<8x1xf32> to vector<8x32xf32>
    %172 = arith.mulf %167, %171 : vector<8x32xf32>
    %173 = vector.broadcast %151 : vector<1x32xf32> to vector<8x32xf32>
    %174 = arith.mulf %172, %173 : vector<8x32xf32>
    %175 = vector.broadcast %152 : vector<1x32xf32> to vector<8x32xf32>
    %176 = arith.addf %174, %175 : vector<8x32xf32>
    %c0_93 = arith.constant 0 : index
    %c0_94 = arith.constant 0 : index
    %c0_95 = arith.constant 0 : index
    %177 = vector.load %arg15[%c0_93, %c0_94, %c0_95] : memref<1x8x32xf32, #tpu.memory_space<vmem>>, vector<1x8x32xf32>
    %178 = vector.shape_cast %177 : vector<1x8x32xf32> to vector<8x32xf32>
    %179 = vector.shape_cast %176 : vector<8x32xf32> to vector<1x8x32xf32>
    tpu.vector_store %arg15[%c0_93, %c0_94, %c0_95], %179 {strides = array<i32>} : memref<1x8x32xf32, #tpu.memory_space<vmem>>, vector<1x8x32xf32>,
    return
  }
  func.func @transform_0(%arg0: i32, %arg1: i32) -> (i32, i32, i32) {
    %c0_i32 = arith.constant 0 : i32
    %c0_i32_0 = arith.constant 0 : i32
    return %arg0, %arg1, %c0_i32 : i32, i32, i32
  }
  func.func @transform_1(%arg0: i32, %arg1: i32) -> (i32, i32) {
    %c0_i32 = arith.constant 0 : i32
    %c0_i32_0 = arith.constant 0 : i32
    %c0_i32_1 = arith.constant 0 : i32
    return %c0_i32, %c0_i32_0 : i32, i32
  }
  func.func @transform_2(%arg0: i32, %arg1: i32) -> (i32, i32) {
    %c0_i32 = arith.constant 0 : i32
    %c0_i32_0 = arith.constant 0 : i32
    %c0_i32_1 = arith.constant 0 : i32
    return %c0_i32, %c0_i32_0 : i32, i32
  }
  func.func @transform_3(%arg0: i32, %arg1: i32) -> (i32, i32) {
    %c0_i32 = arith.constant 0 : i32
    %c0_i32_0 = arith.constant 0 : i32
    %c0_i32_1 = arith.constant 0 : i32
    return %c0_i32, %c0_i32_0 : i32, i32
  }
  func.func @transform_4(%arg0: i32, %arg1: i32) -> (i32, i32) {
    %c0_i32 = arith.constant 0 : i32
    %c0_i32_0 = arith.constant 0 : i32
    %c0_i32_1 = arith.constant 0 : i32
    return %c0_i32, %c0_i32_0 : i32, i32
  }
  func.func @transform_5(%arg0: i32, %arg1: i32) -> (i32, i32) {
    %c0_i32 = arith.constant 0 : i32
    %c0_i32_0 = arith.constant 0 : i32
    %c0_i32_1 = arith.constant 0 : i32
    return %c0_i32, %c0_i32_0 : i32, i32
  }
  func.func @transform_6(%arg0: i32, %arg1: i32) -> (i32, i32) {
    %c0_i32 = arith.constant 0 : i32
    %c0_i32_0 = arith.constant 0 : i32
    %c0_i32_1 = arith.constant 0 : i32
    return %c0_i32, %c0_i32_0 : i32, i32
  }
  func.func @transform_7(%arg0: i32, %arg1: i32) -> (i32, i32) {
    %c0_i32 = arith.constant 0 : i32
    %c0_i32_0 = arith.constant 0 : i32
    %c0_i32_1 = arith.constant 0 : i32
    return %c0_i32, %c0_i32_0 : i32, i32
  }
  func.func @transform_8(%arg0: i32, %arg1: i32) -> (i32, i32) {
    %c0_i32 = arith.constant 0 : i32
    %c0_i32_0 = arith.constant 0 : i32
    %c0_i32_1 = arith.constant 0 : i32
    return %c0_i32, %c0_i32_0 : i32, i32
  }
  func.func @transform_9(%arg0: i32, %arg1: i32) -> (i32, i32) {
    %c0_i32 = arith.constant 0 : i32
    %c0_i32_0 = arith.constant 0 : i32
    %c0_i32_1 = arith.constant 0 : i32
    return %c0_i32, %c0_i32_0 : i32, i32
  }
  func.func @transform_10(%arg0: i32, %arg1: i32) -> (i32, i32) {
    %c0_i32 = arith.constant 0 : i32
    %c0_i32_0 = arith.constant 0 : i32
    %c0_i32_1 = arith.constant 0 : i32
    return %c0_i32, %c0_i32_0 : i32, i32
  }
  func.func @transform_11(%arg0: i32, %arg1: i32) -> (i32, i32) {
    %c0_i32 = arith.constant 0 : i32
    %c0_i32_0 = arith.constant 0 : i32
    %c0_i32_1 = arith.constant 0 : i32
    return %c0_i32, %c0_i32_0 : i32, i32
  }
  func.func @transform_12(%arg0: i32, %arg1: i32) -> (i32, i32) {
    %c0_i32 = arith.constant 0 : i32
    %c0_i32_0 = arith.constant 0 : i32
    %c0_i32_1 = arith.constant 0 : i32
    return %c0_i32, %c0_i32_0 : i32, i32
  }
  func.func @transform_13(%arg0: i32, %arg1: i32) -> (i32, i32, i32) {
    %c0_i32 = arith.constant 0 : i32
    %c0_i32_0 = arith.constant 0 : i32
    return %arg0, %arg1, %c0_i32 : i32, i32, i32
  }
}

</mosaic_0001>

<llo_original>
// kernel: tpu_custom_call.1
$region0: #{tpu_custom_call.1}
  #allocation0 [shape = 'u32[]', space=smem, size = 0x4, offset = 0x4, fixed_abs, tag = 'smem constant byte address 0x4 - core index']
  #allocation1 [shape = 'u32[144,128]{1,0:T(1,128)}', space=vmem, size = 0x12000, scoped, tag = 'internal scratch']
  #allocation2 [shape = 'bf16[4,8,8]{2,1,0:T(8,128)(2,1)}', space=vmem, size = 0x2000, scoped, tag = 'scratch operand']
  #allocation3 [shape = 'bf16[4,8,8]{2,1,0:T(8,128)(2,1)}', space=vmem, size = 0x2000, scoped, tag = 'scratch operand']
  #allocation4 [shape = 'bf16[4,8,8]{2,1,0:T(8,128)(2,1)}', space=vmem, size = 0x2000, scoped, tag = 'scratch operand']
  #allocation5 [shape = 'bf16[8,32]{1,0:T(8,128)(2,1)}', space=vmem, size = 0x800, scoped, tag = 'scratch operand']
  %s0 = inlined_call_operand.vmem [shape: f32[2,8,32], index: 0, kind: input, shape index: {}]
  %s1 = inlined_call_operand.vmem [shape: bf16[32,96], index: 1, kind: input, shape index: {}]
  %s2 = inlined_call_operand.vmem [shape: f32[1,96], index: 2, kind: input, shape index: {}]
  %s3 = inlined_call_operand.vmem [shape: bf16[32,32], index: 3, kind: input, shape index: {}]
  %s4 = inlined_call_operand.vmem [shape: f32[1,32], index: 4, kind: input, shape index: {}]
  %s5 = inlined_call_operand.vmem [shape: f32[1,32], index: 5, kind: input, shape index: {}]
  %s6 = inlined_call_operand.vmem [shape: f32[1,32], index: 6, kind: input, shape index: {}]
  %s7 = inlined_call_operand.hbm [shape: bf16[32,64], index: 7, kind: input, shape index: {}]
  %s8 = inlined_call_operand.vmem [shape: f32[1,64], index: 8, kind: input, shape index: {}]
  %s9 = inlined_call_operand.vmem [shape: bf16[64,32], index: 9, kind: input, shape index: {}]
  %s10 = inlined_call_operand.vmem [shape: f32[1,32], index: 10, kind: input, shape index: {}]
  %s11 = inlined_call_operand.vmem [shape: f32[1,32], index: 11, kind: input, shape index: {}]
  %s12 = inlined_call_operand.vmem [shape: f32[1,32], index: 12, kind: input, shape index: {}]
  %s13 = inlined_call_operand.hbm [shape: f32[2,8,32], index: 13, kind: output, shape index: {}]
  %s14 = sld [smem:[#allocation0]]
  $region89: #{tpu_custom_call.1} parent=0
    _
  %s16 = ssub.s32 1, %s14
  %s17 = scalar_select 0, %s16, %s14
  $region1: #{tpu_custom_call.1} parent=0
    #allocation6 [shape = 'u8[8192]{0}', space=vmem, size = 0x2000, scoped, tag = 'input window, operand 7, single buffered']
    #allocation7 [shape = 's32[2]{0}', space=sflag, size = 0x8, scoped, tag = 'scoped memory for tpu_custom_call.1']
    #allocation8 [shape = 's32[2]{0}', space=sflag, size = 0x8, scoped, tag = 'scoped memory for tpu_custom_call.1']
    #allocation9 [shape = 'u8[8192]{0}', space=vmem, size = 0x2000, scoped, tag = 'output window, operand 0']
    %18 = vsyncpa [#allocation7], 0
    %19 = vsyncpa [#allocation8], 0
    %s20 = scalar_lea.sflag [#allocation8], 1
    %21 = vsyncpa %s20, 0
    loop: start=0, step=1, limit=4
    $region2: #{tpu_custom_call.1} parent=1 // loop_pre_header
      _
    $region3: #{tpu_custom_call.1} parent=1 // loop_header
      %s23 = sphi 0, %s27
      %p24 = scmp.ge.s32.totalorder %s23, 4
      %s30 = sphi 0, %s42
      %s31 = sphi 0, %s38
      %s32 = sphi 0, %s30
      %s33 = sphi 0, %s31
      %s34 = sphi 0, %s32
      %s35 = sphi 0, %s33
      %s47 = sphi 0, %s49
      %s50 = sphi 0, %s47
      %s51 = sphi 0, %s50
      %s67 = sphi 0, %s51
      %s71 = sphi 0, %s71
      %s73 = sphi 0, %s71
      %s74 = sphi 0, %s73
      %s88 = sphi 0, %s74
      %s92 = sphi 0, %s92
      %s94 = sphi 0, %s92
      %s95 = sphi 0, %s94
      %s109 = sphi 0, %s95
      %s113 = sphi 0, %s113
      %s115 = sphi 0, %s113
      %s116 = sphi 0, %s115
      %s130 = sphi 0, %s116
      %s134 = sphi 0, %s134
      %s136 = sphi 0, %s134
      %s137 = sphi 0, %s136
      %s151 = sphi 0, %s137
      %s155 = sphi 0, %s155
      %s157 = sphi 0, %s155
      %s158 = sphi 0, %s157
      %s172 = sphi 0, %s158
      %s176 = sphi 0, %s176
      %s178 = sphi 0, %s176
      %s179 = sphi 0, %s178
      %s193 = sphi 0, %s179
      %s197 = sphi 0, %s197
      %s199 = sphi 0, %s197
      %s200 = sphi 0, %s199
      %s214 = sphi 0, %s200
      %s218 = sphi 0, %s218
      %s220 = sphi 0, %s218
      %s221 = sphi 0, %s220
      %s235 = sphi 0, %s221
      %s239 = sphi 0, %s239
      %s241 = sphi 0, %s239
      %s242 = sphi 0, %s241
      %s256 = sphi 0, %s242
      %s260 = sphi 0, %s260
      %s262 = sphi 0, %s260
      %s263 = sphi 0, %s262
      %s277 = sphi 0, %s263
      %s281 = sphi 0, %s281
      %s283 = sphi 0, %s281
      %s284 = sphi 0, %s283
      %s298 = sphi 0, %s284
      %s302 = sphi 0, %s302
      %s304 = sphi 0, %s302
      %s305 = sphi 0, %s304
      %s319 = sphi 0, %s305
      %s327 = sphi 0, %s329
      %s330 = sphi 0, %s327
      %s331 = sphi 0, %s330
      %s347 = sphi 0, %s331
    $region4: #{tpu_custom_call.1} parent=1 // loop_header_branch
      %26 = sbr.rel (%p24) target = $region8
    $region5: #{tpu_custom_call.1} parent=1 // loop_body
      %s28 = ssub.s32 %s23, 1
      %s29 = ssub.s32 %s23, 2
      %s36 = sadd.s32 1, %s31
      %p37 = scmp.ge.s32.totalorder %s36, 1
      %s38 = scalar_select %p37, 0, %s36
      %s39 = sadd.s32 1, %s30
      %s40 = scalar_select %p37, %s39, %s30
      %p41 = scmp.ge.s32.totalorder %s40, 2
      %s42 = scalar_select %p41, 0, %s40
      %s43 = ssub.s32 %s30, %s42
      %s44 = ssub.s32 %s31, %s38
      %s45 = sor.u32 %s43, %s44
      %p46 = scmp.eq.s32.totalorder %s45, 0
      %s48 = sadd.s32 %s47, 1
      %s49 = scalar_select %p46, %s47, %s48
      %p52 = pneg %p46
      %p53 = scmp.eq.s32.totalorder %s23, 1
      %p54 = por %p52, %p53
      %p55 = scmp.ne.s32.totalorder %s47, %s50
      %p56 = scmp.eq.s32.totalorder %s23, 0
      %p57 = por %p55, %p56
      %p58 = scmp.ne.s32.totalorder %s47, %s50
      %p59 = scmp.eq.s32.totalorder %s28, 1
      %p60 = por %p58, %p59
      %p61 = scmp.ne.s32.totalorder %s50, %s51
      %p62 = scmp.eq.s32.totalorder %s28, 0
      %p63 = por %p61, %p62
      %p64 = scmp.ne.s32.totalorder %s50, %s51
      %p65 = scmp.eq.s32.totalorder %s29, 1
      %p66 = por %p64, %p65
      %p68 = scmp.ne.s32.totalorder %s51, %s67
      %p69 = scmp.eq.s32.totalorder %s29, 0
      %p70 = por %p68, %p69
      %s72 = sadd.s32 %s71, 1
      %p75 = scmp.eq.s32.totalorder %s23, 1
      %p76 = scmp.ne.s32.totalorder %s71, %s73
      %p77 = scmp.eq.s32.totalorder %s23, 0
      %p78 = por %p76, %p77
      %p79 = scmp.ne.s32.totalorder %s71, %s73
      %p80 = scmp.eq.s32.totalorder %s28, 1
      %p81 = por %p79, %p80
      %p82 = scmp.ne.s32.totalorder %s73, %s74
      %p83 = scmp.eq.s32.totalorder %s28, 0
      %p84 = por %p82, %p83
      %p85 = scmp.ne.s32.totalorder %s73, %s74
      %p86 = scmp.eq.s32.totalorder %s29, 1
      %p87 = por %p85, %p86
      %p89 = scmp.ne.s32.totalorder %s74, %s88
      %p90 = scmp.eq.s32.totalorder %s29, 0
      %p91 = por %p89, %p90
      %s93 = sadd.s32 %s92, 1
      %p96 = scmp.eq.s32.totalorder %s23, 1
      %p97 = scmp.ne.s32.totalorder %s92, %s94
      %p98 = scmp.eq.s32.totalorder %s23, 0
      %p99 = por %p97, %p98
      %p100 = scmp.ne.s32.totalorder %s92, %s94
      %p101 = scmp.eq.s32.totalorder %s28, 1
      %p102 = por %p100, %p101
      %p103 = scmp.ne.s32.totalorder %s94, %s95
      %p104 = scmp.eq.s32.totalorder %s28, 0
      %p105 = por %p103, %p104
      %p106 = scmp.ne.s32.totalorder %s94, %s95
      %p107 = scmp.eq.s32.totalorder %s29, 1
      %p108 = por %p106, %p107
      %p110 = scmp.ne.s32.totalorder %s95, %s109
      %p111 = scmp.eq.s32.totalorder %s29, 0
      %p112 = por %p110, %p111
      %s114 = sadd.s32 %s113, 1
      %p117 = scmp.eq.s32.totalorder %s23, 1
      %p118 = scmp.ne.s32.totalorder %s113, %s115
      %p119 = scmp.eq.s32.totalorder %s23, 0
      %p120 = por %p118, %p119
      %p121 = scmp.ne.s32.totalorder %s113, %s115
      %p122 = scmp.eq.s32.totalorder %s28, 1
      %p123 = por %p121, %p122
      %p124 = scmp.ne.s32.totalorder %s115, %s116
      %p125 = scmp.eq.s32.totalorder %s28, 0
      %p126 = por %p124, %p125
      %p127 = scmp.ne.s32.totalorder %s115, %s116
      %p128 = scmp.eq.s32.totalorder %s29, 1
      %p129 = por %p127, %p128
      %p131 = scmp.ne.s32.totalorder %s116, %s130
      %p132 = scmp.eq.s32.totalorder %s29, 0
      %p133 = por %p131, %p132
      %s135 = sadd.s32 %s134, 1
      %p138 = scmp.eq.s32.totalorder %s23, 1
      %p139 = scmp.ne.s32.totalorder %s134, %s136
      %p140 = scmp.eq.s32.totalorder %s23, 0
      %p141 = por %p139, %p140
      %p142 = scmp.ne.s32.totalorder %s134, %s136
      %p143 = scmp.eq.s32.totalorder %s28, 1
      %p144 = por %p142, %p143
      %p145 = scmp.ne.s32.totalorder %s136, %s137
      %p146 = scmp.eq.s32.totalorder %s28, 0
      %p147 = por %p145, %p146
      %p148 = scmp.ne.s32.totalorder %s136, %s137
      %p149 = scmp.eq.s32.totalorder %s29, 1
      %p150 = por %p148, %p149
      %p152 = scmp.ne.s32.totalorder %s137, %s151
      %p153 = scmp.eq.s32.totalorder %s29, 0
      %p154 = por %p152, %p153
      %s156 = sadd.s32 %s155, 1
      %p159 = scmp.eq.s32.totalorder %s23, 1
      %p160 = scmp.ne.s32.totalorder %s155, %s157
      %p161 = scmp.eq.s32.totalorder %s23, 0
      %p162 = por %p160, %p161
      %p163 = scmp.ne.s32.totalorder %s155, %s157
      %p164 = scmp.eq.s32.totalorder %s28, 1
      %p165 = por %p163, %p164
      %p166 = scmp.ne.s32.totalorder %s157, %s158
      %p167 = scmp.eq.s32.totalorder %s28, 0
      %p168 = por %p166, %p167
      %p169 = scmp.ne.s32.totalorder %s157, %s158
      %p170 = scmp.eq.s32.totalorder %s29, 1
      %p171 = por %p169, %p170
      %p173 = scmp.ne.s32.totalorder %s158, %s172
      %p174 = scmp.eq.s32.totalorder %s29, 0
      %p175 = por %p173, %p174
      %s177 = sadd.s32 %s176, 1
      %p180 = scmp.eq.s32.totalorder %s23, 1
      %p181 = scmp.ne.s32.totalorder %s176, %s178
      %p182 = scmp.eq.s32.totalorder %s23, 0
      %p183 = por %p181, %p182
      %p184 = scmp.ne.s32.totalorder %s176, %s178
      %p185 = scmp.eq.s32.totalorder %s28, 1
      %p186 = por %p184, %p185
      %p187 = scmp.ne.s32.totalorder %s178, %s179
      %p188 = scmp.eq.s32.totalorder %s28, 0
      %p189 = por %p187, %p188
      %p190 = scmp.ne.s32.totalorder %s178, %s179
      %p191 = scmp.eq.s32.totalorder %s29, 1
      %p192 = por %p190, %p191
      %p194 = scmp.ne.s32.totalorder %s179, %s193
      %p195 = scmp.eq.s32.totalorder %s29, 0
      %p196 = por %p194, %p195
      %s198 = sadd.s32 %s197, 1
      %p201 = scmp.eq.s32.totalorder %s23, 1
      %p202 = scmp.ne.s32.totalorder %s197, %s199
      %p203 = scmp.eq.s32.totalorder %s23, 0
      %p204 = por %p202, %p203
      %p205 = scmp.ne.s32.totalorder %s197, %s199
      %p206 = scmp.eq.s32.totalorder %s28, 1
      %p207 = por %p205, %p206
      %p208 = scmp.ne.s32.totalorder %s199, %s200
      %p209 = scmp.eq.s32.totalorder %s28, 0
      %p210 = por %p208, %p209
      %p211 = scmp.ne.s32.totalorder %s199, %s200
      %p212 = scmp.eq.s32.totalorder %s29, 1
      %p213 = por %p211, %p212
      %p215 = scmp.ne.s32.totalorder %s200, %s214
      %p216 = scmp.eq.s32.totalorder %s29, 0
      %p217 = por %p215, %p216
      %s219 = sadd.s32 %s218, 1
      %p222 = scmp.eq.s32.totalorder %s23, 1
      %p223 = scmp.ne.s32.totalorder %s218, %s220
      %p224 = scmp.eq.s32.totalorder %s23, 0
      %p225 = por %p223, %p224
      %p226 = scmp.ne.s32.totalorder %s218, %s220
      %p227 = scmp.eq.s32.totalorder %s28, 1
      %p228 = por %p226, %p227
      %p229 = scmp.ne.s32.totalorder %s220, %s221
      %p230 = scmp.eq.s32.totalorder %s28, 0
      %p231 = por %p229, %p230
      %p232 = scmp.ne.s32.totalorder %s220, %s221
      %p233 = scmp.eq.s32.totalorder %s29, 1
      %p234 = por %p232, %p233
      %p236 = scmp.ne.s32.totalorder %s221, %s235
      %p237 = scmp.eq.s32.totalorder %s29, 0
      %p238 = por %p236, %p237
      %s240 = sadd.s32 %s239, 1
      %p243 = scmp.eq.s32.totalorder %s23, 1
      %p244 = scmp.ne.s32.totalorder %s239, %s241
      %p245 = scmp.eq.s32.totalorder %s23, 0
      %p246 = por %p244, %p245
      %p247 = scmp.ne.s32.totalorder %s239, %s241
      %p248 = scmp.eq.s32.totalorder %s28, 1
      %p249 = por %p247, %p248
      %p250 = scmp.ne.s32.totalorder %s241, %s242
      %p251 = scmp.eq.s32.totalorder %s28, 0
      %p252 = por %p250, %p251
      %p253 = scmp.ne.s32.totalorder %s241, %s242
      %p254 = scmp.eq.s32.totalorder %s29, 1
      %p255 = por %p253, %p254
      %p257 = scmp.ne.s32.totalorder %s242, %s256
      %p258 = scmp.eq.s32.totalorder %s29, 0
      %p259 = por %p257, %p258
      %s261 = sadd.s32 %s260, 1
      %p264 = scmp.eq.s32.totalorder %s23, 1
      %p265 = scmp.ne.s32.totalorder %s260, %s262
      %p266 = scmp.eq.s32.totalorder %s23, 0
      %p267 = por %p265, %p266
      %p268 = scmp.ne.s32.totalorder %s260, %s262
      %p269 = scmp.eq.s32.totalorder %s28, 1
      %p270 = por %p268, %p269
      %p271 = scmp.ne.s32.totalorder %s262, %s263
      %p272 = scmp.eq.s32.totalorder %s28, 0
      %p273 = por %p271, %p272
      %p274 = scmp.ne.s32.totalorder %s262, %s263
      %p275 = scmp.eq.s32.totalorder %s29, 1
      %p276 = por %p274, %p275
      %p278 = scmp.ne.s32.totalorder %s263, %s277
      %p279 = scmp.eq.s32.totalorder %s29, 0
      %p280 = por %p278, %p279
      %s282 = sadd.s32 %s281, 1
      %p285 = scmp.eq.s32.totalorder %s23, 1
      %p286 = scmp.ne.s32.totalorder %s281, %s283
      %p287 = scmp.eq.s32.totalorder %s23, 0
      %p288 = por %p286, %p287
      %p289 = scmp.ne.s32.totalorder %s281, %s283
      %p290 = scmp.eq.s32.totalorder %s28, 1
      %p291 = por %p289, %p290
      %p292 = scmp.ne.s32.totalorder %s283, %s284
      %p293 = scmp.eq.s32.totalorder %s28, 0
      %p294 = por %p292, %p293
      %p295 = scmp.ne.s32.totalorder %s283, %s284
      %p296 = scmp.eq.s32.totalorder %s29, 1
      %p297 = por %p295, %p296
      %p299 = scmp.ne.s32.totalorder %s284, %s298
      %p300 = scmp.eq.s32.totalorder %s29, 0
      %p301 = por %p299, %p300
      %s303 = sadd.s32 %s302, 1
      %p306 = scmp.eq.s32.totalorder %s23, 1
      %p307 = scmp.ne.s32.totalorder %s302, %s304
      %p308 = scmp.eq.s32.totalorder %s23, 0
      %p309 = por %p307, %p308
      %p310 = scmp.ne.s32.totalorder %s302, %s304
      %p311 = scmp.eq.s32.totalorder %s28, 1
      %p312 = por %p310, %p311
      %p313 = scmp.ne.s32.totalorder %s304, %s305
      %p314 = scmp.eq.s32.totalorder %s28, 0
      %p315 = por %p313, %p314
      %p316 = scmp.ne.s32.totalorder %s304, %s305
      %p317 = scmp.eq.s32.totalorder %s29, 1
      %p318 = por %p316, %p317
      %p320 = scmp.ne.s32.totalorder %s305, %s319
      %p321 = scmp.eq.s32.totalorder %s29, 0
      %p322 = por %p320, %p321
      %s323 = ssub.s32 %s30, %s42
      %s324 = ssub.s32 %s31, %s38
      %s325 = sor.u32 %s323, %s324
      %p326 = scmp.eq.s32.totalorder %s325, 0
      %s328 = sadd.s32 %s327, 1
      %s329 = scalar_select %p326, %s327, %s328
      %p332 = pneg %p326
      %p333 = scmp.eq.s32.totalorder %s23, 1
      %p334 = por %p332, %p333
      %p335 = scmp.ne.s32.totalorder %s327, %s330
      %p336 = scmp.eq.s32.totalorder %s23, 0
      %p337 = por %p335, %p336
      %p338 = scmp.ne.s32.totalorder %s327, %s330
      %p339 = scmp.eq.s32.totalorder %s28, 1
      %p340 = por %p338, %p339
      %p341 = scmp.ne.s32.totalorder %s330, %s331
      %p342 = scmp.eq.s32.totalorder %s28, 0
      %p343 = por %p341, %p342
      %p344 = scmp.ne.s32.totalorder %s330, %s331
      %p345 = scmp.eq.s32.totalorder %s29, 1
      %p346 = por %p344, %p345
      %p348 = scmp.ne.s32.totalorder %s331, %s347
      %p349 = scmp.eq.s32.totalorder %s29, 0
      %p350 = por %p348, %p349
      %p351 = scmp.le.s32.totalorder 1, %s23
      %p352 = scmp.lt.s32.totalorder %s23, 3
      %p353 = pnand %p351, %p352
      %p354 = pneg %p353
      // Predicated region
      $region9: #{tpu_custom_call.1} parent=5 // pred_check
        _
      $region10: #{tpu_custom_call.1} parent=5 // pred_check_branch
        %356 = sbr.rel (%p353) target = $region12
      $region11: #{tpu_custom_call.1} parent=5 // pred_region
        %s357 = ssub.s32 %s23, 1
        // Predicated region
        $region13: #{tpu_custom_call.1} parent=11 // pred_check
          %p358 = pneg %p84
        $region14: #{tpu_custom_call.1} parent=11 // pred_check_branch
          %360 = sbr.rel (%p358) target = $region16
        $region15: #{tpu_custom_call.1} parent=11 // pred_region
          _
        $region16: #{tpu_custom_call.1} parent=11 // pred_fallthru
          _
        // Predicated region
        $region17: #{tpu_custom_call.1} parent=11 // pred_check
          %p361 = pneg %p105
        $region18: #{tpu_custom_call.1} parent=11 // pred_check_branch
          %363 = sbr.rel (%p361) target = $region20
        $region19: #{tpu_custom_call.1} parent=11 // pred_region
          _
        $region20: #{tpu_custom_call.1} parent=11 // pred_fallthru
          _
        // Predicated region
        $region21: #{tpu_custom_call.1} parent=11 // pred_check
          %p364 = pneg %p126
        $region22: #{tpu_custom_call.1} parent=11 // pred_check_branch
          %366 = sbr.rel (%p364) target = $region24
        $region23: #{tpu_custom_call.1} parent=11 // pred_region
          _
        $region24: #{tpu_custom_call.1} parent=11 // pred_fallthru
          _
        // Predicated region
        $region25: #{tpu_custom_call.1} parent=11 // pred_check
          %p367 = pneg %p147
        $region26: #{tpu_custom_call.1} parent=11 // pred_check_branch
          %369 = sbr.rel (%p367) target = $region28
        $region27: #{tpu_custom_call.1} parent=11 // pred_region
          _
        $region28: #{tpu_custom_call.1} parent=11 // pred_fallthru
          _
        // Predicated region
        $region29: #{tpu_custom_call.1} parent=11 // pred_check
          %p370 = pneg %p168
        $region30: #{tpu_custom_call.1} parent=11 // pred_check_branch
          %372 = sbr.rel (%p370) target = $region32
        $region31: #{tpu_custom_call.1} parent=11 // pred_region
          _
        $region32: #{tpu_custom_call.1} parent=11 // pred_fallthru
          _
        // Predicated region
        $region33: #{tpu_custom_call.1} parent=11 // pred_check
          %p373 = pneg %p189
        $region34: #{tpu_custom_call.1} parent=11 // pred_check_branch
          %375 = sbr.rel (%p373) target = $region36
        $region35: #{tpu_custom_call.1} parent=11 // pred_region
          _
        $region36: #{tpu_custom_call.1} parent=11 // pred_fallthru
          _
        // Predicated region
        $region37: #{tpu_custom_call.1} parent=11 // pred_check
          %p376 = pneg %p210
        $region38: #{tpu_custom_call.1} parent=11 // pred_check_branch
          %378 = sbr.rel (%p376) target = $region40
        $region39: #{tpu_custom_call.1} parent=11 // pred_region
          %s380 = ssub.s32 256, 256
          %381 = vsyncadd [#allocation7], %s380
          %s382 = sshll.u32 [#allocation6], 4
          %s383 = int_to_ptr.vmem [resolvable:$true] %s382
          %388 = dma.hbm_to_vmem [thread:$0]  %s7, 256, %s383, [#allocation7], 64, 64, 4
        $region40: #{tpu_custom_call.1} parent=11 // pred_fallthru
          _
        // Predicated region
        $region41: #{tpu_custom_call.1} parent=11 // pred_check
          %p389 = pneg %p231
        $region42: #{tpu_custom_call.1} parent=11 // pred_check_branch
          %391 = sbr.rel (%p389) target = $region44
        $region43: #{tpu_custom_call.1} parent=11 // pred_region
          _
        $region44: #{tpu_custom_call.1} parent=11 // pred_fallthru
          _
        // Predicated region
        $region45: #{tpu_custom_call.1} parent=11 // pred_check
          %p392 = pneg %p252
        $region46: #{tpu_custom_call.1} parent=11 // pred_check_branch
          %394 = sbr.rel (%p392) target = $region48
        $region47: #{tpu_custom_call.1} parent=11 // pred_region
          _
        $region48: #{tpu_custom_call.1} parent=11 // pred_fallthru
          _
        // Predicated region
        $region49: #{tpu_custom_call.1} parent=11 // pred_check
          %p395 = pneg %p273
        $region50: #{tpu_custom_call.1} parent=11 // pred_check_branch
          %397 = sbr.rel (%p395) target = $region52
        $region51: #{tpu_custom_call.1} parent=11 // pred_region
          _
        $region52: #{tpu_custom_call.1} parent=11 // pred_fallthru
          _
        // Predicated region
        $region53: #{tpu_custom_call.1} parent=11 // pred_check
          %p398 = pneg %p294
        $region54: #{tpu_custom_call.1} parent=11 // pred_check_branch
          %400 = sbr.rel (%p398) target = $region56
        $region55: #{tpu_custom_call.1} parent=11 // pred_region
          _
        $region56: #{tpu_custom_call.1} parent=11 // pred_fallthru
          _
        // Predicated region
        $region57: #{tpu_custom_call.1} parent=11 // pred_check
          %p401 = pneg %p315
        $region58: #{tpu_custom_call.1} parent=11 // pred_check_branch
          %403 = sbr.rel (%p401) target = $region60
        $region59: #{tpu_custom_call.1} parent=11 // pred_region
          _
        $region60: #{tpu_custom_call.1} parent=11 // pred_fallthru
          _
      $region12: #{tpu_custom_call.1} parent=5 // pred_fallthru
        _
      %p404 = scmp.lt.s32.totalorder %s23, 2
      // Predicated region
      $region61: #{tpu_custom_call.1} parent=5 // pred_check
        %p405 = pneg %p404
      $region62: #{tpu_custom_call.1} parent=5 // pred_check_branch
        %407 = sbr.rel (%p405) target = $region64
      $region63: #{tpu_custom_call.1} parent=5 // pred_region
        // Predicated region
        $region65: #{tpu_custom_call.1} parent=63 // pred_check
          %p408 = pneg %p57
        $region66: #{tpu_custom_call.1} parent=63 // pred_check_branch
          %410 = sbr.rel (%p408) target = $region68
        $region67: #{tpu_custom_call.1} parent=63 // pred_region
          %p411 = scmp.lt.s32.totalorder %s30, 1
          %s412 = scalar_select %p411, %s30, 1
          %p413 = scmp.lt.s32.totalorder %s31, 0
          %s414 = scalar_select %p413, %s31, 0
          %s415 = sadd.s32 %s414, %s412
          %s416 = smul.addr %s415, 8
          %s417 = scalar_lea.vmem %s0, %s416
        $region68: #{tpu_custom_call.1} parent=63 // pred_fallthru
          _
      $region64: #{tpu_custom_call.1} parent=5 // pred_fallthru
        _
      %p418 = scmp.le.s32.totalorder 1, %s23
      %p419 = scmp.lt.s32.totalorder %s23, 3
      %p420 = pnand %p418, %p419
      %p421 = pneg %p420
      // Predicated region
      $region69: #{tpu_custom_call.1} parent=5 // pred_check
        _
      $region70: #{tpu_custom_call.1} parent=5 // pred_check_branch
        %423 = sbr.rel (%p420) target = $region72
      $region71: #{tpu_custom_call.1} parent=5 // pred_region
        %s424 = ssub.s32 %s23, 1
        // Predicated region
        $region73: #{tpu_custom_call.1} parent=71 // pred_check
          %p425 = pneg %p210
        $region74: #{tpu_custom_call.1} parent=71 // pred_check_branch
          %427 = sbr.rel (%p425) target = $region76
        $region75: #{tpu_custom_call.1} parent=71 // pred_region
          %428 = dma.done [#allocation7], 256
        $region76: #{tpu_custom_call.1} parent=71 // pred_fallthru
          _
        %p429 = scmp.lt.s32.totalorder %s32, 1
        %s430 = scalar_select %p429, %s32, 1
        %p431 = scmp.lt.s32.totalorder %s33, 0
        %s432 = scalar_select %p431, %s33, 0
        %s433 = sadd.s32 %s432, %s430
        %s434 = smul.addr %s433, 8
        %s435 = scalar_lea.vmem %s0, %s434
        %p436 = pneg %p63
        %p437 = pneg %p60
        %p438 = pneg %p84
        %p439 = pneg %p81
        %p440 = pneg %p105
        %p441 = pneg %p102
        %p442 = pneg %p126
        %p443 = pneg %p123
        %p444 = pneg %p147
        %p445 = pneg %p144
        %p446 = pneg %p168
        %p447 = pneg %p165
        %p448 = pneg %p189
        %p449 = pneg %p186
        %p450 = pneg %p210
        %p451 = pneg %p207
        %p452 = pneg %p231
        %p453 = pneg %p228
        %p454 = pneg %p252
        %p455 = pneg %p249
        %p456 = pneg %p273
        %p457 = pneg %p270
        %p458 = pneg %p294
        %p459 = pneg %p291
        %p460 = pneg %p315
        %p461 = pneg %p312
        %p462 = pneg %p343
        %p463 = pneg %p340
        %s464 = sand.u32 %s330, 1
        %s465 = scalar_lea.sflag [#allocation8], %s464
        %s466 = sand.u32 %s330, 1
        %s467 = smul.addr %s466, 8
        %s468 = scalar_lea.vmem [#allocation9], %s467
        %p469 = scmp.lt.s32.totalorder %s32, 1
        %s470 = scalar_select %p469, %s32, 1
        %p471 = scmp.lt.s32.totalorder %s33, 0
        %s472 = scalar_select %p471, %s33, 0
        %s473 = sadd.s32 %s472, %s470
        %s474 = smul.addr %s473, 8
        %s475 = scalar_lea.vmem %s0, %s474
        %v477 = vld [vmem:[%s475] sm:$0xff]
        %v478 = vpack.c.bf16 %v477, %v477
        %v479 = vld [vmem:[%s1] sm:$0xf]
        %v480 = vld [vmem:[%s1 + $0x4] sm:$0xf]
        %v481 = vld [vmem:[%s1 + $0x8] sm:$0xf]
        %v482 = vld [vmem:[%s1 + $0xc] sm:$0xf]
        %v483 = vld [vmem:[%s2] sm:$0x1]
        %v485 = vlaneseq
        %v486 = vshrl.u32 %v485, 7
        %v487 = vsub.s32 0, %v486
        %v488 = vrot.slane %v483, %v487
        %v494 = vunpack.c.l.b16 %v479
        %v495 = vunpack.c.l.b16 %v480
        %v496 = vunpack.c.l.b16 %v481
        %v497 = vunpack.c.l.b16 %v482
        %v498 = vpack.c.b16 %v495, %v494
        %v499 = vpack.c.b16 %v497, %v496
        %vm502 = vcmask 261120
        %v504 = vsel %vm502, %v478, 0
        %506 = vmatprep.subr.bf16.mxu0 0
        %507 = vmatpush1.bf16.msra.mxu0 %v498
        %508 = vmatprep.subr.bf16.mxu0 0
        %509 = vmatpush1.bf16.msra.mxu0 %v499
        %510 = vmatprep.subr.bf16.mxu0 0
        %511 = vmatpush1.bf16.msra.mxu0 0
        %512 = vmatprep.subr.bf16.mxu0 0
        %513 = vmatpush1.bf16.msra.mxu0 0
        %514 = vmatprep.subr.bf16.mxu0 0
        %515 = vmatpush1.bf16.msra.mxu0 0
        %516 = vmatprep.subr.bf16.mxu0 0
        %517 = vmatpush1.bf16.msra.mxu0 0
        %518 = vmatprep.subr.bf16.mxu0 0
        %519 = vmatpush1.bf16.msra.mxu0 0
        %520 = vmatprep.subr.bf16.mxu0 0
        %521 = vmatpush1.bf16.msra.mxu0 0
        %522 = vmatprep.subr.bf16.mxu0 0
        %523 = vmatpush1.bf16.msra.mxu0 0
        %524 = vmatprep.subr.bf16.mxu0 0
        %525 = vmatpush1.bf16.msra.mxu0 0
        %526 = vmatprep.subr.bf16.mxu0 0
        %527 = vmatpush1.bf16.msra.mxu0 0
        %528 = vmatprep.subr.bf16.mxu0 0
        %529 = vmatpush1.bf16.msra.mxu0 0
        %530 = vmatprep.subr.bf16.mxu0 0
        %531 = vmatpush1.bf16.msra.mxu0 0
        %532 = vmatprep.subr.bf16.mxu0 0
        %533 = vmatpush1.bf16.msra.mxu0 0
        %534 = vmatprep.subr.bf16.mxu0 0
        %535 = vmatpush1.bf16.msra.mxu0 0
        %536 = vmatprep.subr.bf16.mxu0 0
        %537 = vmatpush1.bf16.msra.mxu0 0
        %538 = vmatprep.mubr.bf16.mxu0 0
        %539 = vmatmul.mubr.bf16.gmra.mrb[0].mxu0 %v504
        %v540 = vpop.f32.mrb[0].mxu0
        %v541 = vadd.f32 %v488, %v540
        %v542 = vpop.f32.mrb[0].mxu0
        %v543 = vpop.f32.mrb[0].mxu0
        %v544 = vpop.f32.mrb[0].mxu0
        %545 = vdwg.mxu0
        %v546 = vpack.c.bf16 %v541, %v541
        %v548 = vunpack.c.l.b16 %v546
        %v549 = vpack.c.b16 %v548, %v548
        %550 = vrot.lane.b32.xlu0 %v549, 96
        %v551 = vpop.permute.xlu0 %550
        %vm553 = vcmask 60416
        %554 = vst.msk [vmem:[#allocation3] sm:$0xf] %vm553, %v551
        %555 = vrot.lane.b32.xlu0 %v549, 64
        %v556 = vpop.permute.xlu0 %555
        %558 = vst.msk [vmem:[#allocation4] sm:$0xf] %vm553, %v556
        %559 = vrot.lane.b32.xlu0 %v549, 88
        %v560 = vpop.permute.xlu0 %559
        %s562 = scalar_lea.vmem [#allocation3], 4
        %563 = vst.msk [vmem:[%s562] sm:$0xf] %vm553, %v560
        %564 = vrot.lane.b32.xlu0 %v549, 56
        %v565 = vpop.permute.xlu0 %564
        %s567 = scalar_lea.vmem [#allocation4], 4
        %568 = vst.msk [vmem:[%s567] sm:$0xf] %vm553, %v565
        %569 = vrot.lane.b32.xlu0 %v549, 80
        %v570 = vpop.permute.xlu0 %569
        %s572 = scalar_lea.vmem [#allocation3], 8
        %573 = vst.msk [vmem:[%s572] sm:$0xf] %vm553, %v570
        %574 = vrot.lane.b32.xlu0 %v549, 48
        %v575 = vpop.permute.xlu0 %574
        %s577 = scalar_lea.vmem [#allocation4], 8
        %578 = vst.msk [vmem:[%s577] sm:$0xf] %vm553, %v575
        %579 = vrot.lane.b32.xlu0 %v549, 72
        %v580 = vpop.permute.xlu0 %579
        %s582 = scalar_lea.vmem [#allocation3], 12
        %583 = vst.msk [vmem:[%s582] sm:$0xf] %vm553, %v580
        %584 = vrot.lane.b32.xlu0 %v549, 40
        %v585 = vpop.permute.xlu0 %584
        %s587 = scalar_lea.vmem [#allocation4], 12
        %588 = vst.msk [vmem:[%s587] sm:$0xf] %vm553, %v585
        %589 = vst.msk [vmem:[#allocation2] sm:$0xf] %vm553, %v546
        %590 = vrot.lane.b32.xlu0 %v549, 120
        %v591 = vpop.permute.xlu0 %590
        %s593 = scalar_lea.vmem [#allocation2], 4
        %594 = vst.msk [vmem:[%s593] sm:$0xf] %vm553, %v591
        %595 = vrot.lane.b32.xlu0 %v549, 112
        %v596 = vpop.permute.xlu0 %595
        %s598 = scalar_lea.vmem [#allocation2], 8
        %599 = vst.msk [vmem:[%s598] sm:$0xf] %vm553, %v596
        %600 = vrot.lane.b32.xlu0 %v549, 104
        %v601 = vpop.permute.xlu0 %600
        %s603 = scalar_lea.vmem [#allocation2], 12
        %604 = vst.msk [vmem:[%s603] sm:$0xf] %vm553, %v601
        %v605 = vld [vmem:[#allocation2] sm:$0xf]
        %v606 = vld [vmem:[#allocation2 + $0x4] sm:$0xf]
        %v607 = vld [vmem:[#allocation2 + $0x8] sm:$0xf]
        %v608 = vld [vmem:[#allocation2 + $0xc] sm:$0xf]
        %v609 = vld [vmem:[#allocation3] sm:$0xf]
        %v610 = vld [vmem:[#allocation3 + $0x4] sm:$0xf]
        %v611 = vld [vmem:[#allocation3 + $0x8] sm:$0xf]
        %v612 = vld [vmem:[#allocation3 + $0xc] sm:$0xf]
        %vm613 = vcmask 64512
        %v615 = vsel %vm613, %v605, 0
        %v618 = vsel %vm613, %v609, 0
        %620 = vmatprep.subr.bf16.mxu0 0
        %621 = vmatpush1.bf16.xpose.msra.mxu0 %v618
        %622 = vmatprep.subr.bf16.mxu0 0
        %623 = vmatpush1.bf16.xpose.msra.mxu0 0
        %624 = vmatprep.subr.bf16.mxu0 0
        %625 = vmatpush1.bf16.xpose.msra.mxu0 0
        %626 = vmatprep.subr.bf16.mxu0 0
        %627 = vmatpush1.bf16.xpose.msra.mxu0 0
        %628 = vmatprep.subr.bf16.mxu0 0
        %629 = vmatpush1.bf16.xpose.msra.mxu0 0
        %630 = vmatprep.subr.bf16.mxu0 0
        %631 = vmatpush1.bf16.xpose.msra.mxu0 0
        %632 = vmatprep.subr.bf16.mxu0 0
        %633 = vmatpush1.bf16.xpose.msra.mxu0 0
        %634 = vmatprep.subr.bf16.mxu0 0
        %635 = vmatpush1.bf16.xpose.msra.mxu0 0
        %636 = vmatprep.subr.bf16.mxu0 0
        %637 = vmatpush1.bf16.xpose.msra.mxu0 0
        %638 = vmatprep.subr.bf16.mxu0 0
        %639 = vmatpush1.bf16.xpose.msra.mxu0 0
        %640 = vmatprep.subr.bf16.mxu0 0
        %641 = vmatpush1.bf16.xpose.msra.mxu0 0
        %642 = vmatprep.subr.bf16.mxu0 0
        %643 = vmatpush1.bf16.xpose.msra.mxu0 0
        %644 = vmatprep.subr.bf16.mxu0 0
        %645 = vmatpush1.bf16.xpose.msra.mxu0 0
        %646 = vmatprep.subr.bf16.mxu0 0
        %647 = vmatpush1.bf16.xpose.msra.mxu0 0
        %648 = vmatprep.subr.bf16.mxu0 0
        %649 = vmatpush1.bf16.xpose.msra.mxu0 0
        %650 = vmatprep.subr.bf16.mxu0 0
        %651 = vmatpush1.bf16.xpose.msra.mxu0 0
        %652 = vmatprep.mubr.bf16.mxu0 0
        %653 = vmatmul.mubr.bf16.gmra.mrb[0].mxu0 %v615
        %v654 = vpop.f32.mrb[0].mxu0
        %v655 = vadd.f32 0.0, %v654
        %v656 = vpop.f32.mrb[0].mxu0
        %v657 = vpop.f32.mrb[0].mxu0
        %v658 = vpop.f32.mrb[0].mxu0
        %659 = vdwg.mxu0
        %v661 = vsel %vm613, %v606, 0
        %v664 = vsel %vm613, %v610, 0
        %666 = vmatprep.subr.bf16.mxu0 0
        %667 = vmatpush1.bf16.xpose.msra.mxu0 %v664
        %668 = vmatprep.subr.bf16.mxu0 0
        %669 = vmatpush1.bf16.xpose.msra.mxu0 0
        %670 = vmatprep.subr.bf16.mxu0 0
        %671 = vmatpush1.bf16.xpose.msra.mxu0 0
        %672 = vmatprep.subr.bf16.mxu0 0
        %673 = vmatpush1.bf16.xpose.msra.mxu0 0
        %674 = vmatprep.subr.bf16.mxu0 0
        %675 = vmatpush1.bf16.xpose.msra.mxu0 0
        %676 = vmatprep.subr.bf16.mxu0 0
        %677 = vmatpush1.bf16.xpose.msra.mxu0 0
        %678 = vmatprep.subr.bf16.mxu0 0
        %679 = vmatpush1.bf16.xpose.msra.mxu0 0
        %680 = vmatprep.subr.bf16.mxu0 0
        %681 = vmatpush1.bf16.xpose.msra.mxu0 0
        %682 = vmatprep.subr.bf16.mxu0 0
        %683 = vmatpush1.bf16.xpose.msra.mxu0 0
        %684 = vmatprep.subr.bf16.mxu0 0
        %685 = vmatpush1.bf16.xpose.msra.mxu0 0
        %686 = vmatprep.subr.bf16.mxu0 0
        %687 = vmatpush1.bf16.xpose.msra.mxu0 0
        %688 = vmatprep.subr.bf16.mxu0 0
        %689 = vmatpush1.bf16.xpose.msra.mxu0 0
        %690 = vmatprep.subr.bf16.mxu0 0
        %691 = vmatpush1.bf16.xpose.msra.mxu0 0
        %692 = vmatprep.subr.bf16.mxu0 0
        %693 = vmatpush1.bf16.xpose.msra.mxu0 0
        %694 = vmatprep.subr.bf16.mxu0 0
        %695 = vmatpush1.bf16.xpose.msra.mxu0 0
        %696 = vmatprep.subr.bf16.mxu0 0
        %697 = vmatpush1.bf16.xpose.msra.mxu0 0
        %698 = vmatprep.mubr.bf16.mxu0 0
        %699 = vmatmul.mubr.bf16.gmra.mrb[0].mxu0 %v661
        %v700 = vpop.f32.mrb[0].mxu0
        %v701 = vadd.f32 0.0, %v700
        %v702 = vpop.f32.mrb[0].mxu0
        %v703 = vpop.f32.mrb[0].mxu0
        %v704 = vpop.f32.mrb[0].mxu0
        %705 = vdwg.mxu0
        %v707 = vsel %vm613, %v607, 0
        %v710 = vsel %vm613, %v611, 0
        %712 = vmatprep.subr.bf16.mxu0 0
        %713 = vmatpush1.bf16.xpose.msra.mxu0 %v710
        %714 = vmatprep.subr.bf16.mxu0 0
        %715 = vmatpush1.bf16.xpose.msra.mxu0 0
        %716 = vmatprep.subr.bf16.mxu0 0
        %717 = vmatpush1.bf16.xpose.msra.mxu0 0
        %718 = vmatprep.subr.bf16.mxu0 0
        %719 = vmatpush1.bf16.xpose.msra.mxu0 0
        %720 = vmatprep.subr.bf16.mxu0 0
        %721 = vmatpush1.bf16.xpose.msra.mxu0 0
        %722 = vmatprep.subr.bf16.mxu0 0
        %723 = vmatpush1.bf16.xpose.msra.mxu0 0
        %724 = vmatprep.subr.bf16.mxu0 0
        %725 = vmatpush1.bf16.xpose.msra.mxu0 0
        %726 = vmatprep.subr.bf16.mxu0 0
        %727 = vmatpush1.bf16.xpose.msra.mxu0 0
        %728 = vmatprep.subr.bf16.mxu0 0
        %729 = vmatpush1.bf16.xpose.msra.mxu0 0
        %730 = vmatprep.subr.bf16.mxu0 0
        %731 = vmatpush1.bf16.xpose.msra.mxu0 0
        %732 = vmatprep.subr.bf16.mxu0 0
        %733 = vmatpush1.bf16.xpose.msra.mxu0 0
        %734 = vmatprep.subr.bf16.mxu0 0
        %735 = vmatpush1.bf16.xpose.msra.mxu0 0
        %736 = vmatprep.subr.bf16.mxu0 0
        %737 = vmatpush1.bf16.xpose.msra.mxu0 0
        %738 = vmatprep.subr.bf16.mxu0 0
        %739 = vmatpush1.bf16.xpose.msra.mxu0 0
        %740 = vmatprep.subr.bf16.mxu0 0
        %741 = vmatpush1.bf16.xpose.msra.mxu0 0
        %742 = vmatprep.subr.bf16.mxu0 0
        %743 = vmatpush1.bf16.xpose.msra.mxu0 0
        %744 = vmatprep.mubr.bf16.mxu0 0
        %745 = vmatmul.mubr.bf16.gmra.mrb[0].mxu0 %v707
        %v746 = vpop.f32.mrb[0].mxu0
        %v747 = vadd.f32 0.0, %v746
        %v748 = vpop.f32.mrb[0].mxu0
        %v749 = vpop.f32.mrb[0].mxu0
        %v750 = vpop.f32.mrb[0].mxu0
        %751 = vdwg.mxu0
        %v753 = vsel %vm613, %v608, 0
        %v756 = vsel %vm613, %v612, 0
        %758 = vmatprep.subr.bf16.mxu0 0
        %759 = vmatpush1.bf16.xpose.msra.mxu0 %v756
        %760 = vmatprep.subr.bf16.mxu0 0
        %761 = vmatpush1.bf16.xpose.msra.mxu0 0
        %762 = vmatprep.subr.bf16.mxu0 0
        %763 = vmatpush1.bf16.xpose.msra.mxu0 0
        %764 = vmatprep.subr.bf16.mxu0 0
        %765 = vmatpush1.bf16.xpose.msra.mxu0 0
        %766 = vmatprep.subr.bf16.mxu0 0
        %767 = vmatpush1.bf16.xpose.msra.mxu0 0
        %768 = vmatprep.subr.bf16.mxu0 0
        %769 = vmatpush1.bf16.xpose.msra.mxu0 0
        %770 = vmatprep.subr.bf16.mxu0 0
        %771 = vmatpush1.bf16.xpose.msra.mxu0 0
        %772 = vmatprep.subr.bf16.mxu0 0
        %773 = vmatpush1.bf16.xpose.msra.mxu0 0
        %774 = vmatprep.subr.bf16.mxu0 0
        %775 = vmatpush1.bf16.xpose.msra.mxu0 0
        %776 = vmatprep.subr.bf16.mxu0 0
        %777 = vmatpush1.bf16.xpose.msra.mxu0 0
        %778 = vmatprep.subr.bf16.mxu0 0
        %779 = vmatpush1.bf16.xpose.msra.mxu0 0
        %780 = vmatprep.subr.bf16.mxu0 0
        %781 = vmatpush1.bf16.xpose.msra.mxu0 0
        %782 = vmatprep.subr.bf16.mxu0 0
        %783 = vmatpush1.bf16.xpose.msra.mxu0 0
        %784 = vmatprep.subr.bf16.mxu0 0
        %785 = vmatpush1.bf16.xpose.msra.mxu0 0
        %786 = vmatprep.subr.bf16.mxu0 0
        %787 = vmatpush1.bf16.xpose.msra.mxu0 0
        %788 = vmatprep.subr.bf16.mxu0 0
        %789 = vmatpush1.bf16.xpose.msra.mxu0 0
        %790 = vmatprep.mubr.bf16.mxu0 0
        %791 = vmatmul.mubr.bf16.gmra.mrb[0].mxu0 %v753
        %v792 = vpop.f32.mrb[0].mxu0
        %v793 = vadd.f32 0.0, %v792
        %v794 = vpop.f32.mrb[0].mxu0
        %v795 = vpop.f32.mrb[0].mxu0
        %v796 = vpop.f32.mrb[0].mxu0
        %797 = vdwg.mxu0
        %v798 = vsel %vm613, %v655, -inf
        %799 = vmax.xlane.f32.xlu0 %v798
        %v800 = vpop.xlane.xlu0 %799
        %v801 = vsel %vm613, %v701, -inf
        %802 = vmax.xlane.f32.xlu0 %v801
        %v803 = vpop.xlane.xlu0 %802
        %v804 = vsel %vm613, %v747, -inf
        %805 = vmax.xlane.f32.xlu0 %v804
        %v806 = vpop.xlane.xlu0 %805
        %v807 = vsel %vm613, %v793, -inf
        %808 = vmax.xlane.f32.xlu0 %v807
        %v809 = vpop.xlane.xlu0 %808
        %v810 = vsub.f32 %v655, %v800
        %v811 = vsub.f32 %v701, %v803
        %v812 = vsub.f32 %v747, %v806
        %v813 = vsub.f32 %v793, %v809
        %v814 = vmul.f32 %v810, 1.442695
        %v815 = vpow.pop %v814
        %v816 = vmul.f32 %v811, 1.442695
        %v817 = vpow.pop %v816
        %v818 = vmul.f32 %v812, 1.442695
        %v819 = vpow.pop %v818
        %v820 = vmul.f32 %v813, 1.442695
        %v821 = vpow.pop %v820
        %v822 = vsel %vm613, %v815, 0.0
        %823 = vadd.xlane.f32.xlu0 %v822
        %v824 = vpop.xlane.xlu0 %823
        %v825 = vsel %vm613, %v817, 0.0
        %826 = vadd.xlane.f32.xlu0 %v825
        %v827 = vpop.xlane.xlu0 %826
        %v828 = vsel %vm613, %v819, 0.0
        %829 = vadd.xlane.f32.xlu0 %v828
        %v830 = vpop.xlane.xlu0 %829
        %v831 = vsel %vm613, %v821, 0.0
        %832 = vadd.xlane.f32.xlu0 %v831
        %v833 = vpop.xlane.xlu0 %832
        %v834 = vrcp.pop %v824
        %v835 = vrcp.pop %v827
        %v836 = vrcp.pop %v830
        %v837 = vrcp.pop %v833
        %v838 = vmul.f32 %v815, %v834
        %v839 = vmul.f32 %v817, %v835
        %v840 = vmul.f32 %v819, %v836
        %v841 = vmul.f32 %v821, %v837
        %v842 = vpack.c.bf16 %v838, %v838
        %v843 = vpack.c.bf16 %v839, %v839
        %v844 = vpack.c.bf16 %v840, %v840
        %v845 = vpack.c.bf16 %v841, %v841
        %v846 = vld [vmem:[#allocation4] sm:$0xf]
        %v847 = vld [vmem:[#allocation4 + $0x4] sm:$0xf]
        %v848 = vld [vmem:[#allocation4 + $0x8] sm:$0xf]
        %v849 = vld [vmem:[#allocation4 + $0xc] sm:$0xf]
        %v851 = vsel %vm613, %v842, 0
        %vm853 = vcmask 1043456
        %v855 = vsel %vm853, %v846, 0
        %857 = vmatprep.subr.bf16.mxu0 0
        %858 = vmatpush1.bf16.msra.mxu0 %v855
        %859 = vmatprep.subr.bf16.mxu0 0
        %860 = vmatpush1.bf16.msra.mxu0 0
        %861 = vmatprep.subr.bf16.mxu0 0
        %862 = vmatpush1.bf16.msra.mxu0 0
        %863 = vmatprep.subr.bf16.mxu0 0
        %864 = vmatpush1.bf16.msra.mxu0 0
        %865 = vmatprep.subr.bf16.mxu0 0
        %866 = vmatpush1.bf16.msra.mxu0 0
        %867 = vmatprep.subr.bf16.mxu0 0
        %868 = vmatpush1.bf16.msra.mxu0 0
        %869 = vmatprep.subr.bf16.mxu0 0
        %870 = vmatpush1.bf16.msra.mxu0 0
        %871 = vmatprep.subr.bf16.mxu0 0
        %872 = vmatpush1.bf16.msra.mxu0 0
        %873 = vmatprep.subr.bf16.mxu0 0
        %874 = vmatpush1.bf16.msra.mxu0 0
        %875 = vmatprep.subr.bf16.mxu0 0
        %876 = vmatpush1.bf16.msra.mxu0 0
        %877 = vmatprep.subr.bf16.mxu0 0
        %878 = vmatpush1.bf16.msra.mxu0 0
        %879 = vmatprep.subr.bf16.mxu0 0
        %880 = vmatpush1.bf16.msra.mxu0 0
        %881 = vmatprep.subr.bf16.mxu0 0
        %882 = vmatpush1.bf16.msra.mxu0 0
        %883 = vmatprep.subr.bf16.mxu0 0
        %884 = vmatpush1.bf16.msra.mxu0 0
        %885 = vmatprep.subr.bf16.mxu0 0
        %886 = vmatpush1.bf16.msra.mxu0 0
        %887 = vmatprep.subr.bf16.mxu0 0
        %888 = vmatpush1.bf16.msra.mxu0 0
        %889 = vmatprep.mubr.bf16.mxu0 0
        %890 = vmatmul.mubr.bf16.gmra.mrb[0].mxu0 %v851
        %v891 = vpop.f32.mrb[0].mxu0
        %v892 = vadd.f32 0.0, %v891
        %v893 = vpop.f32.mrb[0].mxu0
        %v894 = vpop.f32.mrb[0].mxu0
        %v895 = vpop.f32.mrb[0].mxu0
        %896 = vdwg.mxu0
        %v898 = vsel %vm613, %v843, 0
        %v901 = vsel %vm853, %v847, 0
        %903 = vmatprep.subr.bf16.mxu0 0
        %904 = vmatpush1.bf16.msra.mxu0 %v901
        %905 = vmatprep.subr.bf16.mxu0 0
        %906 = vmatpush1.bf16.msra.mxu0 0
        %907 = vmatprep.subr.bf16.mxu0 0
        %908 = vmatpush1.bf16.msra.mxu0 0
        %909 = vmatprep.subr.bf16.mxu0 0
        %910 = vmatpush1.bf16.msra.mxu0 0
        %911 = vmatprep.subr.bf16.mxu0 0
        %912 = vmatpush1.bf16.msra.mxu0 0
        %913 = vmatprep.subr.bf16.mxu0 0
        %914 = vmatpush1.bf16.msra.mxu0 0
        %915 = vmatprep.subr.bf16.mxu0 0
        %916 = vmatpush1.bf16.msra.mxu0 0
        %917 = vmatprep.subr.bf16.mxu0 0
        %918 = vmatpush1.bf16.msra.mxu0 0
        %919 = vmatprep.subr.bf16.mxu0 0
        %920 = vmatpush1.bf16.msra.mxu0 0
        %921 = vmatprep.subr.bf16.mxu0 0
        %922 = vmatpush1.bf16.msra.mxu0 0
        %923 = vmatprep.subr.bf16.mxu0 0
        %924 = vmatpush1.bf16.msra.mxu0 0
        %925 = vmatprep.subr.bf16.mxu0 0
        %926 = vmatpush1.bf16.msra.mxu0 0
        %927 = vmatprep.subr.bf16.mxu0 0
        %928 = vmatpush1.bf16.msra.mxu0 0
        %929 = vmatprep.subr.bf16.mxu0 0
        %930 = vmatpush1.bf16.msra.mxu0 0
        %931 = vmatprep.subr.bf16.mxu0 0
        %932 = vmatpush1.bf16.msra.mxu0 0
        %933 = vmatprep.subr.bf16.mxu0 0
        %934 = vmatpush1.bf16.msra.mxu0 0
        %935 = vmatprep.mubr.bf16.mxu0 0
        %936 = vmatmul.mubr.bf16.gmra.mrb[0].mxu0 %v898
        %v937 = vpop.f32.mrb[0].mxu0
        %v938 = vadd.f32 0.0, %v937
        %v939 = vpop.f32.mrb[0].mxu0
        %v940 = vpop.f32.mrb[0].mxu0
        %v941 = vpop.f32.mrb[0].mxu0
        %942 = vdwg.mxu0
        %v944 = vsel %vm613, %v844, 0
        %v947 = vsel %vm853, %v848, 0
        %949 = vmatprep.subr.bf16.mxu0 0
        %950 = vmatpush1.bf16.msra.mxu0 %v947
        %951 = vmatprep.subr.bf16.mxu0 0
        %952 = vmatpush1.bf16.msra.mxu0 0
        %953 = vmatprep.subr.bf16.mxu0 0
        %954 = vmatpush1.bf16.msra.mxu0 0
        %955 = vmatprep.subr.bf16.mxu0 0
        %956 = vmatpush1.bf16.msra.mxu0 0
        %957 = vmatprep.subr.bf16.mxu0 0
        %958 = vmatpush1.bf16.msra.mxu0 0
        %959 = vmatprep.subr.bf16.mxu0 0
        %960 = vmatpush1.bf16.msra.mxu0 0
        %961 = vmatprep.subr.bf16.mxu0 0
        %962 = vmatpush1.bf16.msra.mxu0 0
        %963 = vmatprep.subr.bf16.mxu0 0
        %964 = vmatpush1.bf16.msra.mxu0 0
        %965 = vmatprep.subr.bf16.mxu0 0
        %966 = vmatpush1.bf16.msra.mxu0 0
        %967 = vmatprep.subr.bf16.mxu0 0
        %968 = vmatpush1.bf16.msra.mxu0 0
        %969 = vmatprep.subr.bf16.mxu0 0
        %970 = vmatpush1.bf16.msra.mxu0 0
        %971 = vmatprep.subr.bf16.mxu0 0
        %972 = vmatpush1.bf16.msra.mxu0 0
        %973 = vmatprep.subr.bf16.mxu0 0
        %974 = vmatpush1.bf16.msra.mxu0 0
        %975 = vmatprep.subr.bf16.mxu0 0
        %976 = vmatpush1.bf16.msra.mxu0 0
        %977 = vmatprep.subr.bf16.mxu0 0
        %978 = vmatpush1.bf16.msra.mxu0 0
        %979 = vmatprep.subr.bf16.mxu0 0
        %980 = vmatpush1.bf16.msra.mxu0 0
        %981 = vmatprep.mubr.bf16.mxu0 0
        %982 = vmatmul.mubr.bf16.gmra.mrb[0].mxu0 %v944
        %v983 = vpop.f32.mrb[0].mxu0
        %v984 = vadd.f32 0.0, %v983
        %v985 = vpop.f32.mrb[0].mxu0
        %v986 = vpop.f32.mrb[0].mxu0
        %v987 = vpop.f32.mrb[0].mxu0
        %988 = vdwg.mxu0
        %v990 = vsel %vm613, %v845, 0
        %v993 = vsel %vm853, %v849, 0
        %995 = vmatprep.subr.bf16.mxu0 0
        %996 = vmatpush1.bf16.msra.mxu0 %v993
        %997 = vmatprep.subr.bf16.mxu0 0
        %998 = vmatpush1.bf16.msra.mxu0 0
        %999 = vmatprep.subr.bf16.mxu0 0
        %1000 = vmatpush1.bf16.msra.mxu0 0
        %1001 = vmatprep.subr.bf16.mxu0 0
        %1002 = vmatpush1.bf16.msra.mxu0 0
        %1003 = vmatprep.subr.bf16.mxu0 0
        %1004 = vmatpush1.bf16.msra.mxu0 0
        %1005 = vmatprep.subr.bf16.mxu0 0
        %1006 = vmatpush1.bf16.msra.mxu0 0
        %1007 = vmatprep.subr.bf16.mxu0 0
        %1008 = vmatpush1.bf16.msra.mxu0 0
        %1009 = vmatprep.subr.bf16.mxu0 0
        %1010 = vmatpush1.bf16.msra.mxu0 0
        %1011 = vmatprep.subr.bf16.mxu0 0
        %1012 = vmatpush1.bf16.msra.mxu0 0
        %1013 = vmatprep.subr.bf16.mxu0 0
        %1014 = vmatpush1.bf16.msra.mxu0 0
        %1015 = vmatprep.subr.bf16.mxu0 0
        %1016 = vmatpush1.bf16.msra.mxu0 0
        %1017 = vmatprep.subr.bf16.mxu0 0
        %1018 = vmatpush1.bf16.msra.mxu0 0
        %1019 = vmatprep.subr.bf16.mxu0 0
        %1020 = vmatpush1.bf16.msra.mxu0 0
        %1021 = vmatprep.subr.bf16.mxu0 0
        %1022 = vmatpush1.bf16.msra.mxu0 0
        %1023 = vmatprep.subr.bf16.mxu0 0
        %1024 = vmatpush1.bf16.msra.mxu0 0
        %1025 = vmatprep.subr.bf16.mxu0 0
        %1026 = vmatpush1.bf16.msra.mxu0 0
        %1027 = vmatprep.mubr.bf16.mxu0 0
        %1028 = vmatmul.mubr.bf16.gmra.mrb[0].mxu0 %v990
        %v1029 = vpop.f32.mrb[0].mxu0
        %v1030 = vadd.f32 0.0, %v1029
        %v1031 = vpop.f32.mrb[0].mxu0
        %v1032 = vpop.f32.mrb[0].mxu0
        %v1033 = vpop.f32.mrb[0].mxu0
        %1034 = vdwg.mxu0
        %v1035 = vpack.c.bf16 %v892, %v892
        %1036 = vst.msk [vmem:[#allocation5] sm:$0xf] %vm553, %v1035
        %v1037 = vpack.c.bf16 %v938, %v938
        %v1039 = vunpack.c.l.b16 %v1037
        %v1040 = vpack.c.b16 %v1039, %v1039
        %1041 = vrot.lane.b32.xlu0 %v1040, 8
        %v1042 = vpop.permute.xlu0 %1041
        %vm1044 = vcmask 126016
        %1045 = vst.msk [vmem:[#allocation5] sm:$0xf] %vm1044, %v1042
        %v1046 = vpack.c.bf16 %v984, %v984
        %v1048 = vunpack.c.l.b16 %v1046
        %v1049 = vpack.c.b16 %v1048, %v1048
        %1050 = vrot.lane.b32.xlu0 %v1049, 16
        %v1051 = vpop.permute.xlu0 %1050
        %vm1053 = vcmask 191616
        %1054 = vst.msk [vmem:[#allocation5] sm:$0xf] %vm1053, %v1051
        %v1055 = vpack.c.bf16 %v1030, %v1030
        %v1057 = vunpack.c.l.b16 %v1055
        %v1058 = vpack.c.b16 %v1057, %v1057
        %1059 = vrot.lane.b32.xlu0 %v1058, 24
        %v1060 = vpop.permute.xlu0 %1059
        %vm1062 = vcmask 257216
        %1063 = vst.msk [vmem:[#allocation5] sm:$0xf] %vm1062, %v1060
        %v1064 = vld [vmem:[#allocation5] sm:$0xf]
        %v1065 = vld [vmem:[%s3] sm:$0xf]
        %v1066 = vld [vmem:[%s3 + $0x4] sm:$0xf]
        %v1067 = vld [vmem:[%s3 + $0x8] sm:$0xf]
        %v1068 = vld [vmem:[%s3 + $0xc] sm:$0xf]
        %v1069 = vld [vmem:[%s4] sm:$0x1]
        %v1071 = vlaneseq
        %v1072 = vshrl.u32 %v1071, 7
        %v1073 = vsub.s32 0, %v1072
        %v1074 = vrot.slane %v1069, %v1073
        %v1080 = vunpack.c.l.b16 %v1065
        %v1081 = vunpack.c.l.b16 %v1066
        %v1082 = vunpack.c.l.b16 %v1067
        %v1083 = vunpack.c.l.b16 %v1068
        %v1084 = vpack.c.b16 %v1081, %v1080
        %v1085 = vpack.c.b16 %v1083, %v1082
        %v1089 = vsel %vm502, %v1064, 0
        %1091 = vmatprep.subr.bf16.mxu0 0
        %1092 = vmatpush1.bf16.msra.mxu0 %v1084
        %1093 = vmatprep.subr.bf16.mxu0 0
        %1094 = vmatpush1.bf16.msra.mxu0 %v1085
        %1095 = vmatprep.subr.bf16.mxu0 0
        %1096 = vmatpush1.bf16.msra.mxu0 0
        %1097 = vmatprep.subr.bf16.mxu0 0
        %1098 = vmatpush1.bf16.msra.mxu0 0
        %1099 = vmatprep.subr.bf16.mxu0 0
        %1100 = vmatpush1.bf16.msra.mxu0 0
        %1101 = vmatprep.subr.bf16.mxu0 0
        %1102 = vmatpush1.bf16.msra.mxu0 0
        %1103 = vmatprep.subr.bf16.mxu0 0
        %1104 = vmatpush1.bf16.msra.mxu0 0
        %1105 = vmatprep.subr.bf16.mxu0 0
        %1106 = vmatpush1.bf16.msra.mxu0 0
        %1107 = vmatprep.subr.bf16.mxu0 0
        %1108 = vmatpush1.bf16.msra.mxu0 0
        %1109 = vmatprep.subr.bf16.mxu0 0
        %1110 = vmatpush1.bf16.msra.mxu0 0
        %1111 = vmatprep.subr.bf16.mxu0 0
        %1112 = vmatpush1.bf16.msra.mxu0 0
        %1113 = vmatprep.subr.bf16.mxu0 0
        %1114 = vmatpush1.bf16.msra.mxu0 0
        %1115 = vmatprep.subr.bf16.mxu0 0
        %1116 = vmatpush1.bf16.msra.mxu0 0
        %1117 = vmatprep.subr.bf16.mxu0 0
        %1118 = vmatpush1.bf16.msra.mxu0 0
        %1119 = vmatprep.subr.bf16.mxu0 0
        %1120 = vmatpush1.bf16.msra.mxu0 0
        %1121 = vmatprep.subr.bf16.mxu0 0
        %1122 = vmatpush1.bf16.msra.mxu0 0
        %1123 = vmatprep.mubr.bf16.mxu0 0
        %1124 = vmatmul.mubr.bf16.gmra.mrb[0].mxu0 %v1089
        %v1125 = vpop.f32.mrb[0].mxu0
        %v1126 = vadd.f32 %v1074, %v1125
        %v1127 = vpop.f32.mrb[0].mxu0
        %v1128 = vpop.f32.mrb[0].mxu0
        %v1129 = vpop.f32.mrb[0].mxu0
        %1130 = vdwg.mxu0
        %v1131 = vadd.f32 %v477, %v1126
        %v1132 = vld [vmem:[%s5] sm:$0x1]
        %v1133 = vld [vmem:[%s6] sm:$0x1]
        %v1134 = vsel %vm502, %v1131, 0.0
        %1135 = vadd.xlane.f32.xlu0 %v1134
        %v1136 = vpop.xlane.xlu0 %1135
        %v1137 = vrcp.pop 32.0
        %v1138 = vmul.f32 %v1136, %v1137
        %v1139 = vsub.f32 %v1131, %v1138
        %v1140 = vmul.f32 %v1139, %v1139
        %v1141 = vsel %vm502, %v1140, 0.0
        %1142 = vadd.xlane.f32.xlu0 %v1141
        %v1143 = vpop.xlane.xlu0 %1142
        %v1144 = vmul.f32 %v1143, %v1137
        %v1145 = vadd.f32 %v1144, 1e-06
        %v1146 = vrsqrt.pop %v1145
        %v1147 = vmul.f32 %v1139, %v1146
        %v1149 = vlaneseq
        %v1150 = vshrl.u32 %v1149, 7
        %v1151 = vsub.s32 0, %v1150
        %v1152 = vrot.slane %v1132, %v1151
        %v1154 = vmul.f32 %v1147, %v1152
        %v1156 = vlaneseq
        %v1157 = vshrl.u32 %v1156, 7
        %v1158 = vsub.s32 0, %v1157
        %v1159 = vrot.slane %v1133, %v1158
        %v1161 = vadd.f32 %v1154, %v1159
        %v1162 = vpack.c.bf16 %v1161, %v1161
        %v1163 = vld [vmem:[#allocation6] sm:$0xf]
        %v1164 = vld [vmem:[#allocation6 + $0x4] sm:$0xf]
        %v1165 = vld [vmem:[#allocation6 + $0x8] sm:$0xf]
        %v1166 = vld [vmem:[#allocation6 + $0xc] sm:$0xf]
        %v1167 = vld [vmem:[%s8] sm:$0x1]
        %v1169 = vlaneseq
        %v1170 = vshrl.u32 %v1169, 7
        %v1171 = vsub.s32 0, %v1170
        %v1172 = vrot.slane %v1167, %v1171
        %v1178 = vunpack.c.l.b16 %v1163
        %v1179 = vunpack.c.l.b16 %v1164
        %v1180 = vunpack.c.l.b16 %v1165
        %v1181 = vunpack.c.l.b16 %v1166
        %v1182 = vpack.c.b16 %v1179, %v1178
        %v1183 = vpack.c.b16 %v1181, %v1180
        %v1187 = vsel %vm502, %v1162, 0
        %1189 = vmatprep.subr.bf16.mxu0 0
        %1190 = vmatpush1.bf16.msra.mxu0 %v1182
        %1191 = vmatprep.subr.bf16.mxu0 0
        %1192 = vmatpush1.bf16.msra.mxu0 %v1183
        %1193 = vmatprep.subr.bf16.mxu0 0
        %1194 = vmatpush1.bf16.msra.mxu0 0
        %1195 = vmatprep.subr.bf16.mxu0 0
        %1196 = vmatpush1.bf16.msra.mxu0 0
        %1197 = vmatprep.subr.bf16.mxu0 0
        %1198 = vmatpush1.bf16.msra.mxu0 0
        %1199 = vmatprep.subr.bf16.mxu0 0
        %1200 = vmatpush1.bf16.msra.mxu0 0
        %1201 = vmatprep.subr.bf16.mxu0 0
        %1202 = vmatpush1.bf16.msra.mxu0 0
        %1203 = vmatprep.subr.bf16.mxu0 0
        %1204 = vmatpush1.bf16.msra.mxu0 0
        %1205 = vmatprep.subr.bf16.mxu0 0
        %1206 = vmatpush1.bf16.msra.mxu0 0
        %1207 = vmatprep.subr.bf16.mxu0 0
        %1208 = vmatpush1.bf16.msra.mxu0 0
        %1209 = vmatprep.subr.bf16.mxu0 0
        %1210 = vmatpush1.bf16.msra.mxu0 0
        %1211 = vmatprep.subr.bf16.mxu0 0
        %1212 = vmatpush1.bf16.msra.mxu0 0
        %1213 = vmatprep.subr.bf16.mxu0 0
        %1214 = vmatpush1.bf16.msra.mxu0 0
        %1215 = vmatprep.subr.bf16.mxu0 0
        %1216 = vmatpush1.bf16.msra.mxu0 0
        %1217 = vmatprep.subr.bf16.mxu0 0
        %1218 = vmatpush1.bf16.msra.mxu0 0
        %1219 = vmatprep.subr.bf16.mxu0 0
        %1220 = vmatpush1.bf16.msra.mxu0 0
        %1221 = vmatprep.mubr.bf16.mxu0 0
        %1222 = vmatmul.mubr.bf16.gmra.mrb[0].mxu0 %v1187
        %v1223 = vpop.f32.mrb[0].mxu0
        %v1224 = vadd.f32 %v1172, %v1223
        %v1225 = vpop.f32.mrb[0].mxu0
        %v1226 = vpop.f32.mrb[0].mxu0
        %v1227 = vpop.f32.mrb[0].mxu0
        %1228 = vdwg.mxu0
        %v1229 = vmax.f32 %v1224, 0.0
        %v1230 = vpack.c.bf16 %v1229, %v1229
        %v1231 = vld [vmem:[%s9] sm:$0xf]
        %v1232 = vld [vmem:[%s9 + $0x4] sm:$0xf]
        %v1233 = vld [vmem:[%s9 + $0x8] sm:$0xf]
        %v1234 = vld [vmem:[%s9 + $0xc] sm:$0xf]
        %v1235 = vld [vmem:[%s9 + $0x10] sm:$0xf]
        %v1236 = vld [vmem:[%s9 + $0x14] sm:$0xf]
        %v1237 = vld [vmem:[%s9 + $0x18] sm:$0xf]
        %v1238 = vld [vmem:[%s9 + $0x1c] sm:$0xf]
        %v1239 = vld [vmem:[%s10] sm:$0x1]
        %v1241 = vlaneseq
        %v1242 = vshrl.u32 %v1241, 7
        %v1243 = vsub.s32 0, %v1242
        %v1244 = vrot.slane %v1239, %v1243
        %v1254 = vunpack.c.l.b16 %v1231
        %v1255 = vunpack.c.l.b16 %v1232
        %v1256 = vunpack.c.l.b16 %v1233
        %v1257 = vunpack.c.l.b16 %v1234
        %v1258 = vunpack.c.l.b16 %v1235
        %v1259 = vunpack.c.l.b16 %v1236
        %v1260 = vunpack.c.l.b16 %v1237
        %v1261 = vunpack.c.l.b16 %v1238
        %v1262 = vpack.c.b16 %v1255, %v1254
        %v1263 = vpack.c.b16 %v1257, %v1256
        %v1264 = vpack.c.b16 %v1259, %v1258
        %v1265 = vpack.c.b16 %v1261, %v1260
        %vm1270 = vcmask 523264
        %v1272 = vsel %vm1270, %v1230, 0
        %1274 = vmatprep.subr.bf16.mxu0 0
        %1275 = vmatpush1.bf16.msra.mxu0 %v1262
        %1276 = vmatprep.subr.bf16.mxu0 0
        %1277 = vmatpush1.bf16.msra.mxu0 %v1263
        %1278 = vmatprep.subr.bf16.mxu0 0
        %1279 = vmatpush1.bf16.msra.mxu0 %v1264
        %1280 = vmatprep.subr.bf16.mxu0 0
        %1281 = vmatpush1.bf16.msra.mxu0 %v1265
        %1282 = vmatprep.subr.bf16.mxu0 0
        %1283 = vmatpush1.bf16.msra.mxu0 0
        %1284 = vmatprep.subr.bf16.mxu0 0
        %1285 = vmatpush1.bf16.msra.mxu0 0
        %1286 = vmatprep.subr.bf16.mxu0 0
        %1287 = vmatpush1.bf16.msra.mxu0 0
        %1288 = vmatprep.subr.bf16.mxu0 0
        %1289 = vmatpush1.bf16.msra.mxu0 0
        %1290 = vmatprep.subr.bf16.mxu0 0
        %1291 = vmatpush1.bf16.msra.mxu0 0
        %1292 = vmatprep.subr.bf16.mxu0 0
        %1293 = vmatpush1.bf16.msra.mxu0 0
        %1294 = vmatprep.subr.bf16.mxu0 0
        %1295 = vmatpush1.bf16.msra.mxu0 0
        %1296 = vmatprep.subr.bf16.mxu0 0
        %1297 = vmatpush1.bf16.msra.mxu0 0
        %1298 = vmatprep.subr.bf16.mxu0 0
        %1299 = vmatpush1.bf16.msra.mxu0 0
        %1300 = vmatprep.subr.bf16.mxu0 0
        %1301 = vmatpush1.bf16.msra.mxu0 0
        %1302 = vmatprep.subr.bf16.mxu0 0
        %1303 = vmatpush1.bf16.msra.mxu0 0
        %1304 = vmatprep.subr.bf16.mxu0 0
        %1305 = vmatpush1.bf16.msra.mxu0 0
        %1306 = vmatprep.mubr.bf16.mxu0 0
        %1307 = vmatmul.mubr.bf16.gmra.mrb[0].mxu0 %v1272
        %v1308 = vpop.f32.mrb[0].mxu0
        %v1309 = vadd.f32 %v1244, %v1308
        %v1310 = vpop.f32.mrb[0].mxu0
        %v1311 = vpop.f32.mrb[0].mxu0
        %v1312 = vpop.f32.mrb[0].mxu0
        %1313 = vdwg.mxu0
        %v1314 = vadd.f32 %v1161, %v1309
        %v1315 = vld [vmem:[%s11] sm:$0x1]
        %v1316 = vld [vmem:[%s12] sm:$0x1]
        %v1317 = vsel %vm502, %v1314, 0.0
        %1318 = vadd.xlane.f32.xlu0 %v1317
        %v1319 = vpop.xlane.xlu0 %1318
        %v1320 = vmul.f32 %v1319, %v1137
        %v1321 = vsub.f32 %v1314, %v1320
        %v1322 = vmul.f32 %v1321, %v1321
        %v1323 = vsel %vm502, %v1322, 0.0
        %1324 = vadd.xlane.f32.xlu0 %v1323
        %v1325 = vpop.xlane.xlu0 %1324
        %v1326 = vmul.f32 %v1325, %v1137
        %v1327 = vadd.f32 %v1326, 1e-06
        %v1328 = vrsqrt.pop %v1327
        %v1329 = vmul.f32 %v1321, %v1328
        %v1331 = vlaneseq
        %v1332 = vshrl.u32 %v1331, 7
        %v1333 = vsub.s32 0, %v1332
        %v1334 = vrot.slane %v1315, %v1333
        %v1336 = vmul.f32 %v1329, %v1334
        %v1338 = vlaneseq
        %v1339 = vshrl.u32 %v1338, 7
        %v1340 = vsub.s32 0, %v1339
        %v1341 = vrot.slane %v1316, %v1340
        %v1343 = vadd.f32 %v1336, %v1341
        %1344 = vst.msk [vmem:[%s468] sm:$0xff] %vm502, %v1343
        %s1345 = sand.u32 %s330, 1
        %s1346 = scalar_lea.sflag [#allocation8], %s1345
        %s1347 = sand.u32 %s330, 1
        %s1348 = smul.addr %s1347, 8
        %s1349 = scalar_lea.vmem [#allocation9], %s1348
        // Predicated region
        $region77: #{tpu_custom_call.1} parent=71 // pred_check
          %p1350 = pneg %p340
        $region78: #{tpu_custom_call.1} parent=71 // pred_check_branch
          %1352 = sbr.rel (%p1350) target = $region80
        $region79: #{tpu_custom_call.1} parent=71 // pred_region
          %s1354 = ssub.s32 128, 128
          %1355 = vsyncadd %s1346, %s1354
          %s1356 = sadd.s32 %s33, %s32
          %s1357 = smul.addr %s1356, 128
          %s1358 = scalar_lea.hbm %s13, %s1357
          %s1360 = sshll.u32 %s1349, 4
          %s1361 = int_to_ptr.vmem [resolvable:$true] %s1360
          %1363 = dma.vmem_to_hbm [thread:$0]  %s1361, 128, %s1358, %s1346
        $region80: #{tpu_custom_call.1} parent=71 // pred_fallthru
          _
      $region72: #{tpu_custom_call.1} parent=5 // pred_fallthru
        _
      %p1364 = scmp.le.s32.totalorder 2, %s23
      // Predicated region
      $region81: #{tpu_custom_call.1} parent=5 // pred_check
        %p1365 = pneg %p1364
      $region82: #{tpu_custom_call.1} parent=5 // pred_check_branch
        %1367 = sbr.rel (%p1365) target = $region84
      $region83: #{tpu_custom_call.1} parent=5 // pred_region
        %s1368 = ssub.s32 %s23, 2
        // Predicated region
        $region85: #{tpu_custom_call.1} parent=83 // pred_check
          %p1369 = pneg %p346
        $region86: #{tpu_custom_call.1} parent=83 // pred_check_branch
          %1371 = sbr.rel (%p1369) target = $region88
        $region87: #{tpu_custom_call.1} parent=83 // pred_region
          %s1372 = sand.u32 %s331, 1
          %s1373 = scalar_lea.sflag [#allocation8], %s1372
          %s1374 = sand.u32 %s331, 1
          %s1375 = smul.addr %s1374, 8
          %s1376 = scalar_lea.vmem [#allocation9], %s1375
          %1377 = dma.done %s1373, 128
        $region88: #{tpu_custom_call.1} parent=83 // pred_fallthru
          _
      $region84: #{tpu_custom_call.1} parent=5 // pred_fallthru
        _
    $region6: #{tpu_custom_call.1} parent=1 // loop_footer
      %s27 = sadd.s32 1, %s23
    $region7: #{tpu_custom_call.1} parent=1 // loop_footer_branch
      %22 = sbr.rel target = $region3
    $region8: #{tpu_custom_call.1} parent=1 // loop_exit
      _
    %1378 = vsyncpa [#allocation7], 1
    %s1379 = scalar_lea.sflag [#allocation7], 1
    %1380 = vsyncpa %s1379, 1
    %1381 = vsyncpa [#allocation8], 1
    %s1382 = scalar_lea.sflag [#allocation8], 1
    %1383 = vsyncpa %s1382, 1

</llo_original>
